<compile_context>
chip_gen: v5e
topology: v5e:2x2
jax: 0.10.0
libtpu: 0.0.40
codegen_flags: <defaults>
</compile_context>

<pallas_src>
import functools
import math

import jax
import jax.numpy as jnp
from jax.experimental import pallas as pl
from jax.experimental.pallas import tpu as pltpu

DIMENSION = 4
HIDDEN = 8
EPS = 1.0  # `args.eps` used by PositiveLinear


# ----------------------------------------------------------------------------
# small math helpers (used both in-kernel and in the packing / reference code)
# ----------------------------------------------------------------------------
def _positive(w):
    """PositiveLinear reparameterization (elementwise)."""
    eps = jnp.float32(EPS)
    return jnp.where(w >= 0.0, w + jnp.exp(-eps), jnp.exp(w - eps))


def _softplus(a):
    return jnp.maximum(a, 0.0) + jnp.log1p(jnp.exp(-jnp.abs(a)))


def _sigmoid(a):
    t = jnp.exp(-jnp.abs(a))
    return jnp.where(a >= 0.0, 1.0, t) / (1.0 + t)


def _sp_sig(a):
    """softplus and sigmoid sharing one exp (EUP saver)."""
    t = jnp.exp(-jnp.abs(a))
    inv = 1.0 / (1.0 + t)
    sp = jnp.maximum(a, 0.0) + jnp.log1p(t)
    sg = jnp.where(a >= 0.0, inv, t * inv)
    return sp, sg


def _round_up(n, m):
    return ((n + m - 1) // m) * m


# ----------------------------------------------------------------------------
# single parameter-slab layout (all row offsets are multiples of 8)
# ----------------------------------------------------------------------------
_LAYOUT = (
    ("WE", 48),        # entropy x0-slab  [weights | bias] (cols 0:5)
    ("WP", 32),        # entropy positive prop weights (cols 0:8)
    ("WEB", 72),       # entropy backward stack [P_k^T ; L_k^T ; pad] (cols 0:8)
    ("C_EOUT", 8),     # pos(e_out_w) column            (col 0)
    ("C_ELATOUT", 8),  # e_latout_w column (pad 4->8)   (col 0)
    ("C_CPROPOUT", 8), # pos(d_cpropout_w) column       (col 0)
    ("C_CLATOUT", 8),  # d_clatout_w column (pad 4->8)  (col 0)
    ("WD", 24),        # dissipation x0-slab [weights | bias] (cols 0:5)
    ("WB", 32),        # dissipation x1-slab weights    (cols 0:8)
    ("BB", 32),        # dissipation x1-slab biases     (col 0)
    ("WC", 24),        # dissipation x2-slab weights    (cols 0:8)
    ("BC", 24),        # dissipation x2-slab biases     (col 0)
    ("W_CLATIN", 8),   # d_clatin_w  (8,4)              (cols 0:4)
    ("W_CPROP1", 8),   # pos(d_cprop1_w) (8,8)          (cols 0:8)
    ("W_CLAT1", 8),    # d_clat1_w   (8,4)              (cols 0:4)
    ("WDB", 24),       # x*-path backward stack         (cols 0:8)
)
_OFF = {}
_P_ROWS = 0
for _n, _r in _LAYOUT:
    _OFF[_n] = _P_ROWS
    _P_ROWS += _r


# ----------------------------------------------------------------------------
# the kernel
# ----------------------------------------------------------------------------
def gradient_dynamics_kernel(xa_ref, p_ref, out_ref):
    dot = functools.partial(jnp.dot, preferred_element_type=jnp.float32)
    O = _OFF

    x0a = xa_ref[...]                                    # (5, TB): rows 0..3 = x^T, row 4 = ones

    # ---------------- EntropyNetwork forward (x0-slab GEMM, biases folded) --
    ya = dot(p_ref[O["WE"]:O["WE"] + 48, 0:5], x0a)      # (48, TB)
    wp = p_ref[O["WP"]:O["WP"] + 32, 0:8]

    h0 = _softplus(ya[0:8])
    h1 = _softplus(dot(wp[0:8], h0) + ya[8:16])
    h2 = _softplus(dot(wp[8:16], h1) + ya[16:24])
    h3 = _softplus(dot(wp[16:24], h2) + ya[24:32])
    h4 = _softplus(dot(wp[24:32], h3) + ya[32:40])

    c_eout = p_ref[O["C_EOUT"]:O["C_EOUT"] + 8, 0:1]
    c_elatout = p_ref[O["C_ELATOUT"]:O["C_ELATOUT"] + 8, 0:1]
    z = jnp.sum(c_eout * h4, axis=0, keepdims=True) + ya[40:41]          # (1, TB)

    # ------------- x_star = d(sum S)/dx, S = -softplus(z) -------------------
    # sigmoid'(softplus) rematerialized exactly as 1 - exp(-h_k): no sg_k kept.
    web = p_ref[O["WEB"]:O["WEB"] + 72, 0:8]
    gz = -_sigmoid(z)                                    # (1, TB)
    gx = c_elatout[0:4] * gz                             # lateral_layer_out^T term
    gh = c_eout * gz                                     # output_layer^T -> grad h4
    o = dot(web[56:72], gh * (1.0 - jnp.exp(-h4))); gh = o[0:8]; gx = gx + o[8:12]
    o = dot(web[40:56], gh * (1.0 - jnp.exp(-h3))); gh = o[0:8]; gx = gx + o[8:12]
    o = dot(web[24:40], gh * (1.0 - jnp.exp(-h2))); gh = o[0:8]; gx = gx + o[8:12]
    o = dot(web[8:24],  gh * (1.0 - jnp.exp(-h1))); gh = o[0:8]; gx = gx + o[8:12]
    o = dot(web[0:8],   gh * (1.0 - jnp.exp(-h0)))
    x_star = gx + o[0:4]                                 # (4, TB)

    # ------------- DissipationNetwork: x-path (issued after entropy bwd) ----
    yd = dot(p_ref[O["WD"]:O["WD"] + 24, 0:5], x0a)      # (24, TB), biases folded
    x1 = _softplus(yd[0:8])                              # softplus(x_input_layer(x0))
    a1_base = yd[8:16]                                   # x_lateral_layer_1(x0)
    lin_in_mid = yd[16:20]                               # conjugate_lateral_layer_in_mid(x0)

    yb = dot(p_ref[O["WB"]:O["WB"] + 32, 0:8], x1) + p_ref[O["BB"]:O["BB"] + 32, 0:1]
    x2 = _softplus(yb[0:8])                              # softplus(x_prop_layer1(x1))
    a2_base = yb[8:16]                                   # x_lateral_layer_2(x1)
    cp1m = _softplus(yb[16:24])                          # softplus(conj_prop_layer_1_mid(x1))
    cl1m = yb[24:28]                                     # conj_lateral_layer_1_mid(x1)

    yc = dot(p_ref[O["WC"]:O["WC"] + 24, 0:8], x2) + p_ref[O["BC"]:O["BC"] + 24, 0:1]
    a3_base = yc[0:1]                                    # x_lateral_layer_out(x2)
    cpom = _softplus(yc[8:16])                           # softplus(conj_prop_layer_out_mid(x2))
    clom = yc[16:20]                                     # conj_lateral_layer_out_mid(x2)

    # x*-path weights: each a sublane block at lane 0 (no lane-offset slices).
    w_clatin = p_ref[O["W_CLATIN"]:O["W_CLATIN"] + 8, 0:4]
    w_cprop1 = p_ref[O["W_CPROP1"]:O["W_CPROP1"] + 8, 0:8]
    w_clat1 = p_ref[O["W_CLAT1"]:O["W_CLAT1"] + 8, 0:4]
    wdb_a = p_ref[O["WDB"]:O["WDB"] + 16, 0:8]           # [pos(cprop1)^T ; clat1^T pad]
    wdb_b = p_ref[O["WDB"] + 16:O["WDB"] + 24, 0:8]      # [clatin^T pad]
    c_cpropout = p_ref[O["C_CPROPOUT"]:O["C_CPROPOUT"] + 8, 0:1]
    c_clatout = p_ref[O["C_CLATOUT"]:O["C_CLATOUT"] + 8, 0:1]

    # grad_{x*} Xi_raw(x, x*): hand-written reverse-mode through the x*-path.
    # xstar=None means x* == 0 (the zero-valued terms are skipped at trace time).
    def grad_xstar(xstar):
        a1 = a1_base
        if xstar is not None:
            a1 = a1 + dot(w_clatin, xstar * lin_in_mid)
        s1, g1 = _sp_sig(a1)
        a2 = a2_base + dot(w_cprop1, s1 * cp1m)
        if xstar is not None:
            a2 = a2 + dot(w_clat1, xstar * cl1m)
        s2, g2 = _sp_sig(a2)
        a3 = a3_base + jnp.sum(c_cpropout * (s2 * cpom), axis=0, keepdims=True)
        if xstar is not None:
            a3 = a3 + jnp.sum(c_clatout[0:4] * (xstar * clom), axis=0, keepdims=True)
        g3 = _sigmoid(a3)                                # (1, TB)
        gv = (c_clatout[0:4] * g3) * clom                # direct x* term of a3
        ga2 = ((c_cpropout * g3) * cpom) * g2            # (8, TB)
        o2 = dot(wdb_a, ga2)                             # (16, TB)
        gv = gv + o2[8:12] * cl1m                        # direct x* term of a2
        ga1 = (o2[0:8] * cp1m) * g1
        o1 = dot(wdb_b, ga1)                             # (8, TB)
        return gv + o1[0:4] * lin_in_mid                 # direct x* term of a1

    # x_dot = d(sum Xi)/d x_star = grad Xi_raw(x, x_star) - grad Xi_raw(x, 0)
    out_ref[...] = grad_xstar(x_star) - grad_xstar(None)


# ----------------------------------------------------------------------------
# parameter packing: positive reparam hoisted, everything in ONE (368, 8) slab
# ----------------------------------------------------------------------------
def _wb(w, b):
    """Append the bias as an extra weight column (for the ones-row GEMM fold)."""
    return jnp.concatenate([w, b[:, None]], axis=1)


def pack_params(p):
    pos = _positive

    def z8(a, r):
        return jnp.pad(a, ((0, r - a.shape[0]), (0, 0)))

    blocks = {}

    # Entropy x0-slab (bias folded; prop-layer biases folded into lateral biases).
    blocks["WE"] = jnp.concatenate([
        _wb(p["e_input_w"], p["e_input_b"]),
        _wb(p["e_lat1_w"], p["e_lat1_b"] + p["e_prop1_b"]),
        _wb(p["e_lat2_w"], p["e_lat2_b"] + p["e_prop2_b"]),
        _wb(p["e_lat3_w"], p["e_lat3_b"] + p["e_prop3_b"]),
        _wb(p["e_lat4_w"], p["e_lat4_b"] + p["e_prop4_b"]),
        z8(_wb(p["e_latout_w"], p["e_latout_b"] + p["e_out_b"]), 8),
    ], axis=0)                                                             # (48, 5)

    # Entropy prop layers (PositiveLinear reparam done here once).
    blocks["WP"] = jnp.concatenate([pos(p[f"e_prop{k}_w"]) for k in (1, 2, 3, 4)],
                                   axis=0)                                 # (32, 8)

    # Entropy backward stack: input layer, then per layer [P_k^T ; L_k^T ; pad].
    blocks["WEB"] = jnp.concatenate(
        [z8(p["e_input_w"].T, 8)] +
        [z8(jnp.concatenate([pos(p[f"e_prop{k}_w"]).T, p[f"e_lat{k}_w"].T], axis=0), 16)
         for k in (1, 2, 3, 4)], axis=0)                                   # (72, 8)

    # Column vectors for the out_features==1 layers (each its own block, lane 0).
    blocks["C_EOUT"] = pos(p["e_out_w"]).T                                 # (8, 1)
    blocks["C_ELATOUT"] = z8(p["e_latout_w"].T, 8)                         # (8, 1)
    blocks["C_CPROPOUT"] = pos(p["d_cpropout_w"]).T                        # (8, 1)
    blocks["C_CLATOUT"] = z8(p["d_clatout_w"].T, 8)                        # (8, 1)

    # Dissipation x0-slab (bias folded).
    blocks["WD"] = jnp.concatenate([
        _wb(p["d_xin_w"], p["d_xin_b"]),
        _wb(p["d_xlat1_w"], p["d_xlat1_b"]),
        z8(_wb(p["d_clatinmid_w"], p["d_clatinmid_b"]), 8),
    ], axis=0)                                                             # (24, 5)

    # Dissipation x1-slab weights + biases.
    blocks["WB"] = jnp.concatenate([
        p["d_xprop_w"], p["d_xlat2_w"], p["d_cprop1mid_w"],
        z8(p["d_clat1mid_w"], 8)], axis=0)                                 # (32, 8)
    blocks["BB"] = jnp.concatenate([
        p["d_xprop_b"], p["d_xlat2_b"], p["d_cprop1mid_b"],
        jnp.pad(p["d_clat1mid_b"], (0, 4))])[:, None]                      # (32, 1)

    # Dissipation x2-slab weights + biases.
    blocks["WC"] = jnp.concatenate([
        z8(p["d_xlatout_w"], 8), p["d_cpropoutmid_w"],
        z8(p["d_clatoutmid_w"], 8)], axis=0)                               # (24, 8)
    blocks["BC"] = jnp.concatenate([
        jnp.pad(p["d_xlatout_b"], (0, 7)), p["d_cpropoutmid_b"],
        jnp.pad(p["d_clatoutmid_b"], (0, 4))])[:, None]                    # (24, 1)

    # x*-path forward weights, each its own sublane block at lane 0.
    blocks["W_CLATIN"] = p["d_clatin_w"]                                   # (8, 4)
    blocks["W_CPROP1"] = pos(p["d_cprop1_w"])                              # (8, 8)
    blocks["W_CLAT1"] = p["d_clat1_w"]                                     # (8, 4)

    # x*-path backward (transposed) weights.
    blocks["WDB"] = jnp.concatenate([
        pos(p["d_cprop1_w"]).T,
        z8(p["d_clat1_w"].T, 8),
        z8(p["d_clatin_w"].T, 8)], axis=0)                                 # (24, 8)

    P = jnp.zeros((_P_ROWS, 8), jnp.float32)
    for name, blk in blocks.items():
        r0 = _OFF[name]
        P = P.at[r0:r0 + blk.shape[0], 0:blk.shape[1]].set(blk.astype(jnp.float32))
    return P


# ----------------------------------------------------------------------------
# wrapper
# ----------------------------------------------------------------------------
def gradient_dynamics_forward(params, x, tb=512, core_parallel=False):
    """x: (B, DIMENSION) float32 -> x_dot: (B, DIMENSION) float32."""
    B, D = x.shape
    assert D == DIMENSION
    P = pack_params(params)

    # Batch on lanes: tile must be a multiple of 128; pad B up as needed.
    tb_eff = _round_up(min(tb, _round_up(B, 128)), 128)
    Bp = _round_up(B, tb_eff)
    xT = jnp.pad(x.astype(jnp.float32).T, ((0, 0), (0, Bp - B)))           # (D, Bp)
    xa = jnp.concatenate([xT, jnp.ones((1, Bp), jnp.float32)], axis=0)     # (D+1, Bp)

    # On v7x (2 TensorCores), set core_parallel=True with >=2 grid steps to
    # shard batch tiles across both cores.
    semantics = (pltpu.CORE_PARALLEL,) if core_parallel else ("parallel",)

    out = pl.pallas_call(
        gradient_dynamics_kernel,
        out_shape=jax.ShapeDtypeStruct((D, Bp), jnp.float32),
        grid_spec=pltpu.PrefetchScalarGridSpec(
            num_scalar_prefetch=0,
            grid=(Bp // tb_eff,),
            in_specs=[
                pl.BlockSpec((D + 1, tb_eff), lambda i: (0, i)),   # x (ones-augmented)
                pl.BlockSpec(P.shape, lambda i: (0, 0)),           # single resident weight slab
            ],
            out_specs=pl.BlockSpec((D, tb_eff), lambda i: (0, i)),  # lane-dense output
        ),
        compiler_params=pltpu.CompilerParams(dimension_semantics=semantics),
    )(xa, P)
    return out[:, :B].T


# ----------------------------------------------------------------------------
# deterministic initialization (kaiming-normal weights as in _initialize_weights)
# ----------------------------------------------------------------------------
def init_params(key):
    D, H = DIMENSION, HIDDEN
    w_shapes = {
        # EntropyNetwork
        "e_input_w": (H, D),
        "e_prop1_w": (H, H), "e_prop2_w": (H, H), "e_prop3_w": (H, H), "e_prop4_w": (H, H),
        "e_lat1_w": (H, D), "e_lat2_w": (H, D), "e_lat3_w": (H, D), "e_lat4_w": (H, D),
        "e_out_w": (1, H), "e_latout_w": (1, D),
        # DissipationNetwork
        "d_xin_w": (H, D), "d_xprop_w": (H, H),
        "d_xlat1_w": (H, D), "d_xlat2_w": (H, H), "d_xlatout_w": (1, H),
        "d_cprop1_w": (H, H), "d_cpropout_w": (1, H),
        "d_cprop1mid_w": (H, H), "d_cpropoutmid_w": (H, H),
        "d_clatin_w": (H, D), "d_clat1_w": (H, D), "d_clatout_w": (1, D),
        "d_clatinmid_w": (D, D), "d_clat1mid_w": (D, H), "d_clatoutmid_w": (D, H),
    }
    b_shapes = {
        "e_input_b": H,
        "e_prop1_b": H, "e_prop2_b": H, "e_prop3_b": H, "e_prop4_b": H,
        "e_lat1_b": H, "e_lat2_b": H, "e_lat3_b": H, "e_lat4_b": H,
        "e_out_b": 1, "e_latout_b": 1,
        "d_xin_b": H, "d_xprop_b": H, "d_xlat1_b": H, "d_xlat2_b": H, "d_xlatout_b": 1,
        "d_cprop1mid_b": H, "d_cpropoutmid_b": H,
        "d_clatinmid_b": D, "d_clat1mid_b": D, "d_clatoutmid_b": D,
    }
    names = sorted(w_shapes) + sorted(b_shapes)
    keys = jax.random.split(key, len(names))
    p = {}
    for k, name in zip(keys, names):
        if name.endswith("_w"):
            o, i = w_shapes[name]
            p[name] = math.sqrt(2.0 / i) * jax.random.normal(k, (o, i), jnp.float32)
        else:
            # The PyTorch module zero-inits biases; small random values are used here
            # purely so the self-check also exercises the bias plumbing.
            p[name] = 0.1 * jax.random.normal(k, (b_shapes[name],), jnp.float32)
    return p


# ----------------------------------------------------------------------------
# pure-JAX reference (mirrors the torch module, autograd via jax.grad)
# ----------------------------------------------------------------------------
def _entropy_ref(p, x):
    sp = jax.nn.softplus
    h = sp(x @ p["e_input_w"].T + p["e_input_b"])
    for k in (1, 2, 3, 4):
        h = sp(h @ _positive(p[f"e_prop{k}_w"]).T + p[f"e_prop{k}_b"]
               + x @ p[f"e_lat{k}_w"].T + p[f"e_lat{k}_b"])
    z = (h @ _positive(p["e_out_w"]).T + p["e_out_b"]
         + x @ p["e_latout_w"].T + p["e_latout_b"])
    return -sp(z)


def _dissipation_raw_ref(p, x, xs):
    sp = jax.nn.softplus
    lin_in_mid = x @ p["d_clatinmid_w"].T + p["d_clatinmid_b"]
    xst = sp(x @ p["d_xlat1_w"].T + p["d_xlat1_b"]
             + (xs * lin_in_mid) @ p["d_clatin_w"].T)
    h = sp(x @ p["d_xin_w"].T + p["d_xin_b"])
    cp1m = sp(h @ p["d_cprop1mid_w"].T + p["d_cprop1mid_b"])
    cl1m = h @ p["d_clat1mid_w"].T + p["d_clat1mid_b"]
    xst = sp(h @ p["d_xlat2_w"].T + p["d_xlat2_b"]
             + (xst * cp1m) @ _positive(p["d_cprop1_w"]).T
             + (xs * cl1m) @ p["d_clat1_w"].T)
    h = sp(h @ p["d_xprop_w"].T + p["d_xprop_b"])
    cpom = sp(h @ p["d_cpropoutmid_w"].T + p["d_cpropoutmid_b"])
    clom = h @ p["d_clatoutmid_w"].T + p["d_clatoutmid_b"]
    return sp(h @ p["d_xlatout_w"].T + p["d_xlatout_b"]
              + (xst * cpom) @ _positive(p["d_cpropout_w"]).T
              + (xs * clom) @ p["d_clatout_w"].T)


def gradient_dynamics_ref(p, x):
    x_star = jax.grad(lambda xx: jnp.sum(_entropy_ref(p, xx)))(x)

    def xi(xs):
        zeros = jnp.zeros_like(xs)
        g0 = jax.grad(lambda z: jnp.sum(_dissipation_raw_ref(p, x, z)))(zeros)
        return (_dissipation_raw_ref(p, x, xs) - _dissipation_raw_ref(p, x, zeros)
                - jnp.sum(xs * g0, axis=-1, keepdims=True))

    return jax.grad(lambda xs: jnp.sum(xi(xs)))(x_star)


# ----------------------------------------------------------------------------
if __name__ == "__main__":
    key = jax.random.PRNGKey(0)
    kp, kx = jax.random.split(key)
    params = init_params(kp)

    B = 512
    x = jax.random.normal(kx, (B, DIMENSION), jnp.float32)

    fwd = jax.jit(gradient_dynamics_forward, static_argnames=("tb", "core_parallel"))
    # tb=256 -> 2 grid steps (keeps a second TensorCore busy when core-parallel).
    x_dot = fwd(params, x, tb=256)
    jax.block_until_ready(x_dot)
    assert x_dot.shape == (B, DIMENSION)

    ref = jax.jit(gradient_dynamics_ref)(params, x)
    if not jnp.allclose(x_dot, ref, atol=1e-4, rtol=1e-3):
        err = float(jnp.max(jnp.abs(x_dot - ref)))
        raise AssertionError(f"Pallas kernel does not match JAX reference (max abs err {err:.3e})")

    # Non-multiple-of-128 batch exercises the padding path / single-step grid.
    x_small = x[:100]
    x_dot_small = fwd(params, x_small, tb=512)
    jax.block_until_ready(x_dot_small)
    if not jnp.allclose(x_dot_small, ref[:100], atol=1e-4, rtol=1e-3):
        raise AssertionError("Pallas kernel (padded batch) does not match JAX reference")

    print("KERNEL_OK")
</pallas_src>

<mosaic_0001>
module attributes {stable_mosaic.version = 11 : i64} {
  func.func @gradient_dynamics_kernel(%arg0: i32, %arg1: memref<5x256xf32, #tpu.memory_space<vmem>>, %arg2: memref<368x8xf32, #tpu.memory_space<vmem>>, %arg3: memref<4x256xf32, #tpu.memory_space<vmem>>) attributes {dimension_semantics = [#tpu.dimension_semantics<parallel>], iteration_bounds = array<i64: 2>, scalar_prefetch = 0 : i64, scratch_operands = 0 : i64, tpu.core_type = #tpu.core_type<tc>, window_params = [{transform_indices = @transform_0, window_bounds = array<i64: 5, 256>}, {pipeline_mode = #tpu.pipeline_mode<synchronous>, transform_indices = @transform_1, window_bounds = array<i64: 368, 8>}, {transform_indices = @transform_2, window_bounds = array<i64: 4, 256>}]} {
    %c0 = arith.constant 0 : index
    %c0_0 = arith.constant 0 : index
    %0 = vector.load %arg1[%c0, %c0_0] : memref<5x256xf32, #tpu.memory_space<vmem>>, vector<5x256xf32>
    %c0_1 = arith.constant 0 : index
    %c0_2 = arith.constant 0 : index
    %1 = vector.load %arg2[%c0_1, %c0_2] : memref<368x8xf32, #tpu.memory_space<vmem>>, vector<48x5xf32>
    %cst = arith.constant dense<0.000000e+00> : vector<48x256xf32>
    %2 = tpu.matmul %1, %0, %cst {dimension_numbers = #tpu.dot_dimension_numbers<[1], [0], [0], [1], [0, 0, 1, 1], [], []>} : vector<48x5xf32>, vector<5x256xf32>, vector<48x256xf32> -> vector<48x256xf32>
    %c48 = arith.constant 48 : index
    %c0_3 = arith.constant 0 : index
    %3 = vector.load %arg2[%c48, %c0_3] : memref<368x8xf32, #tpu.memory_space<vmem>>, vector<32x8xf32>
    %4 = vector.extract_strided_slice %2 {offsets = [0, 0], sizes = [8, 256], strides = [1, 1]} : vector<48x256xf32> to vector<8x256xf32>
    %cst_4 = arith.constant 0.000000e+00 : f32
    %5 = vector.broadcast %cst_4 : f32 to vector<8x256xf32>
    %6 = arith.maximumf %4, %5 : vector<8x256xf32>
    %7 = math.absf %4 : vector<8x256xf32>
    %cst_5 = arith.constant 0.000000e+00 : f32
    %8 = vector.broadcast %cst_5 : f32 to vector<8x256xf32>
    %9 = arith.subf %8, %7 : vector<8x256xf32>
    %10 = math.exp %9 : vector<8x256xf32>
    %11 = math.log1p %10 : vector<8x256xf32>
    %12 = arith.addf %6, %11 : vector<8x256xf32>
    %13 = vector.extract_strided_slice %3 {offsets = [0, 0], sizes = [8, 8], strides = [1, 1]} : vector<32x8xf32> to vector<8x8xf32>
    %cst_6 = arith.constant dense<0.000000e+00> : vector<8x256xf32>
    %14 = tpu.matmul %13, %12, %cst_6 {dimension_numbers = #tpu.dot_dimension_numbers<[1], [0], [0], [1], [0, 0, 1, 1], [], []>} : vector<8x8xf32>, vector<8x256xf32>, vector<8x256xf32> -> vector<8x256xf32>
    %15 = vector.extract_strided_slice %2 {offsets = [8, 0], sizes = [8, 256], strides = [1, 1]} : vector<48x256xf32> to vector<8x256xf32>
    %16 = arith.addf %14, %15 : vector<8x256xf32>
    %cst_7 = arith.constant 0.000000e+00 : f32
    %17 = vector.broadcast %cst_7 : f32 to vector<8x256xf32>
    %18 = arith.maximumf %16, %17 : vector<8x256xf32>
    %19 = math.absf %16 : vector<8x256xf32>
    %cst_8 = arith.constant 0.000000e+00 : f32
    %20 = vector.broadcast %cst_8 : f32 to vector<8x256xf32>
    %21 = arith.subf %20, %19 : vector<8x256xf32>
    %22 = math.exp %21 : vector<8x256xf32>
    %23 = math.log1p %22 : vector<8x256xf32>
    %24 = arith.addf %18, %23 : vector<8x256xf32>
    %25 = vector.extract_strided_slice %3 {offsets = [8, 0], sizes = [8, 8], strides = [1, 1]} : vector<32x8xf32> to vector<8x8xf32>
    %cst_9 = arith.constant dense<0.000000e+00> : vector<8x256xf32>
    %26 = tpu.matmul %25, %24, %cst_9 {dimension_numbers = #tpu.dot_dimension_numbers<[1], [0], [0], [1], [0, 0, 1, 1], [], []>} : vector<8x8xf32>, vector<8x256xf32>, vector<8x256xf32> -> vector<8x256xf32>
    %27 = vector.extract_strided_slice %2 {offsets = [16, 0], sizes = [8, 256], strides = [1, 1]} : vector<48x256xf32> to vector<8x256xf32>
    %28 = arith.addf %26, %27 : vector<8x256xf32>
    %cst_10 = arith.constant 0.000000e+00 : f32
    %29 = vector.broadcast %cst_10 : f32 to vector<8x256xf32>
    %30 = arith.maximumf %28, %29 : vector<8x256xf32>
    %31 = math.absf %28 : vector<8x256xf32>
    %cst_11 = arith.constant 0.000000e+00 : f32
    %32 = vector.broadcast %cst_11 : f32 to vector<8x256xf32>
    %33 = arith.subf %32, %31 : vector<8x256xf32>
    %34 = math.exp %33 : vector<8x256xf32>
    %35 = math.log1p %34 : vector<8x256xf32>
    %36 = arith.addf %30, %35 : vector<8x256xf32>
    %37 = vector.extract_strided_slice %3 {offsets = [16, 0], sizes = [8, 8], strides = [1, 1]} : vector<32x8xf32> to vector<8x8xf32>
    %cst_12 = arith.constant dense<0.000000e+00> : vector<8x256xf32>
    %38 = tpu.matmul %37, %36, %cst_12 {dimension_numbers = #tpu.dot_dimension_numbers<[1], [0], [0], [1], [0, 0, 1, 1], [], []>} : vector<8x8xf32>, vector<8x256xf32>, vector<8x256xf32> -> vector<8x256xf32>
    %39 = vector.extract_strided_slice %2 {offsets = [24, 0], sizes = [8, 256], strides = [1, 1]} : vector<48x256xf32> to vector<8x256xf32>
    %40 = arith.addf %38, %39 : vector<8x256xf32>
    %cst_13 = arith.constant 0.000000e+00 : f32
    %41 = vector.broadcast %cst_13 : f32 to vector<8x256xf32>
    %42 = arith.maximumf %40, %41 : vector<8x256xf32>
    %43 = math.absf %40 : vector<8x256xf32>
    %cst_14 = arith.constant 0.000000e+00 : f32
    %44 = vector.broadcast %cst_14 : f32 to vector<8x256xf32>
    %45 = arith.subf %44, %43 : vector<8x256xf32>
    %46 = math.exp %45 : vector<8x256xf32>
    %47 = math.log1p %46 : vector<8x256xf32>
    %48 = arith.addf %42, %47 : vector<8x256xf32>
    %49 = vector.extract_strided_slice %3 {offsets = [24, 0], sizes = [8, 8], strides = [1, 1]} : vector<32x8xf32> to vector<8x8xf32>
    %cst_15 = arith.constant dense<0.000000e+00> : vector<8x256xf32>
    %50 = tpu.matmul %49, %48, %cst_15 {dimension_numbers = #tpu.dot_dimension_numbers<[1], [0], [0], [1], [0, 0, 1, 1], [], []>} : vector<8x8xf32>, vector<8x256xf32>, vector<8x256xf32> -> vector<8x256xf32>
    %51 = vector.extract_strided_slice %2 {offsets = [32, 0], sizes = [8, 256], strides = [1, 1]} : vector<48x256xf32> to vector<8x256xf32>
    %52 = arith.addf %50, %51 : vector<8x256xf32>
    %cst_16 = arith.constant 0.000000e+00 : f32
    %53 = vector.broadcast %cst_16 : f32 to vector<8x256xf32>
    %54 = arith.maximumf %52, %53 : vector<8x256xf32>
    %55 = math.absf %52 : vector<8x256xf32>
    %cst_17 = arith.constant 0.000000e+00 : f32
    %56 = vector.broadcast %cst_17 : f32 to vector<8x256xf32>
    %57 = arith.subf %56, %55 : vector<8x256xf32>
    %58 = math.exp %57 : vector<8x256xf32>
    %59 = math.log1p %58 : vector<8x256xf32>
    %60 = arith.addf %54, %59 : vector<8x256xf32>
    %c152 = arith.constant 152 : index
    %c0_18 = arith.constant 0 : index
    %61 = vector.load %arg2[%c152, %c0_18] : memref<368x8xf32, #tpu.memory_space<vmem>>, vector<8x1xf32>
    %c160 = arith.constant 160 : index
    %c0_19 = arith.constant 0 : index
    %62 = vector.load %arg2[%c160, %c0_19] : memref<368x8xf32, #tpu.memory_space<vmem>>, vector<8x1xf32>
    %63 = vector.broadcast %61 : vector<8x1xf32> to vector<8x256xf32>
    %64 = arith.mulf %63, %60 : vector<8x256xf32>
    %cst_20 = arith.constant dense<0.000000e+00> : vector<256xf32>
    %65 = vector.multi_reduction <add>, %64, %cst_20 [0] : vector<8x256xf32> to vector<256xf32>
    %66 = vector.shape_cast %65 : vector<256xf32> to vector<1x256xf32>
    %67 = vector.extract_strided_slice %2 {offsets = [40, 0], sizes = [1, 256], strides = [1, 1]} : vector<48x256xf32> to vector<1x256xf32>
    %68 = arith.addf %66, %67 : vector<1x256xf32>
    %c80 = arith.constant 80 : index
    %c0_21 = arith.constant 0 : index
    %69 = vector.load %arg2[%c80, %c0_21] : memref<368x8xf32, #tpu.memory_space<vmem>>, vector<72x8xf32>
    %70 = math.absf %68 : vector<1x256xf32>
    %cst_22 = arith.constant 0.000000e+00 : f32
    %71 = vector.broadcast %cst_22 : f32 to vector<1x256xf32>
    %72 = arith.subf %71, %70 : vector<1x256xf32>
    %73 = math.exp %72 : vector<1x256xf32>
    %cst_23 = arith.constant 0.000000e+00 : f32
    %74 = vector.broadcast %cst_23 : f32 to vector<1x256xf32>
    %75 = arith.cmpf oge, %68, %74 : vector<1x256xf32>
    %cst_24 = arith.constant 1.000000e+00 : f32
    %76 = vector.broadcast %cst_24 : f32 to vector<1x256xf32>
    %77 = arith.select %75, %76, %73 : vector<1x256xi1>, vector<1x256xf32>
    %cst_25 = arith.constant 1.000000e+00 : f32
    %78 = vector.broadcast %cst_25 : f32 to vector<1x256xf32>
    %79 = arith.addf %78, %73 : vector<1x256xf32>
    %80 = arith.divf %77, %79 : vector<1x256xf32>
    %cst_26 = arith.constant 0.000000e+00 : f32
    %81 = vector.broadcast %cst_26 : f32 to vector<1x256xf32>
    %82 = arith.subf %81, %80 : vector<1x256xf32>
    %83 = vector.extract_strided_slice %62 {offsets = [0, 0], sizes = [4, 1], strides = [1, 1]} : vector<8x1xf32> to vector<4x1xf32>
    %84 = vector.broadcast %83 : vector<4x1xf32> to vector<4x256xf32>
    %85 = vector.broadcast %82 : vector<1x256xf32> to vector<4x256xf32>
    %86 = arith.mulf %84, %85 : vector<4x256xf32>
    %87 = vector.broadcast %61 : vector<8x1xf32> to vector<8x256xf32>
    %88 = vector.broadcast %82 : vector<1x256xf32> to vector<8x256xf32>
    %89 = arith.mulf %87, %88 : vector<8x256xf32>
    %90 = vector.extract_strided_slice %69 {offsets = [56, 0], sizes = [16, 8], strides = [1, 1]} : vector<72x8xf32> to vector<16x8xf32>
    %cst_27 = arith.constant 0.000000e+00 : f32
    %91 = vector.broadcast %cst_27 : f32 to vector<8x256xf32>
    %92 = arith.subf %91, %60 : vector<8x256xf32>
    %93 = math.exp %92 : vector<8x256xf32>
    %cst_28 = arith.constant 1.000000e+00 : f32
    %94 = vector.broadcast %cst_28 : f32 to vector<8x256xf32>
    %95 = arith.subf %94, %93 : vector<8x256xf32>
    %96 = arith.mulf %89, %95 : vector<8x256xf32>
    %cst_29 = arith.constant dense<0.000000e+00> : vector<16x256xf32>
    %97 = tpu.matmul %90, %96, %cst_29 {dimension_numbers = #tpu.dot_dimension_numbers<[1], [0], [0], [1], [0, 0, 1, 1], [], []>} : vector<16x8xf32>, vector<8x256xf32>, vector<16x256xf32> -> vector<16x256xf32>
    %98 = vector.extract_strided_slice %97 {offsets = [0, 0], sizes = [8, 256], strides = [1, 1]} : vector<16x256xf32> to vector<8x256xf32>
    %99 = vector.extract_strided_slice %97 {offsets = [8, 0], sizes = [4, 256], strides = [1, 1]} : vector<16x256xf32> to vector<4x256xf32>
    %100 = arith.addf %86, %99 : vector<4x256xf32>
    %101 = vector.extract_strided_slice %69 {offsets = [40, 0], sizes = [16, 8], strides = [1, 1]} : vector<72x8xf32> to vector<16x8xf32>
    %cst_30 = arith.constant 0.000000e+00 : f32
    %102 = vector.broadcast %cst_30 : f32 to vector<8x256xf32>
    %103 = arith.subf %102, %48 : vector<8x256xf32>
    %104 = math.exp %103 : vector<8x256xf32>
    %cst_31 = arith.constant 1.000000e+00 : f32
    %105 = vector.broadcast %cst_31 : f32 to vector<8x256xf32>
    %106 = arith.subf %105, %104 : vector<8x256xf32>
    %107 = arith.mulf %98, %106 : vector<8x256xf32>
    %cst_32 = arith.constant dense<0.000000e+00> : vector<16x256xf32>
    %108 = tpu.matmul %101, %107, %cst_32 {dimension_numbers = #tpu.dot_dimension_numbers<[1], [0], [0], [1], [0, 0, 1, 1], [], []>} : vector<16x8xf32>, vector<8x256xf32>, vector<16x256xf32> -> vector<16x256xf32>
    %109 = vector.extract_strided_slice %108 {offsets = [0, 0], sizes = [8, 256], strides = [1, 1]} : vector<16x256xf32> to vector<8x256xf32>
    %110 = vector.extract_strided_slice %108 {offsets = [8, 0], sizes = [4, 256], strides = [1, 1]} : vector<16x256xf32> to vector<4x256xf32>
    %111 = arith.addf %100, %110 : vector<4x256xf32>
    %112 = vector.extract_strided_slice %69 {offsets = [24, 0], sizes = [16, 8], strides = [1, 1]} : vector<72x8xf32> to vector<16x8xf32>
    %cst_33 = arith.constant 0.000000e+00 : f32
    %113 = vector.broadcast %cst_33 : f32 to vector<8x256xf32>
    %114 = arith.subf %113, %36 : vector<8x256xf32>
    %115 = math.exp %114 : vector<8x256xf32>
    %cst_34 = arith.constant 1.000000e+00 : f32
    %116 = vector.broadcast %cst_34 : f32 to vector<8x256xf32>
    %117 = arith.subf %116, %115 : vector<8x256xf32>
    %118 = arith.mulf %109, %117 : vector<8x256xf32>
    %cst_35 = arith.constant dense<0.000000e+00> : vector<16x256xf32>
    %119 = tpu.matmul %112, %118, %cst_35 {dimension_numbers = #tpu.dot_dimension_numbers<[1], [0], [0], [1], [0, 0, 1, 1], [], []>} : vector<16x8xf32>, vector<8x256xf32>, vector<16x256xf32> -> vector<16x256xf32>
    %120 = vector.extract_strided_slice %119 {offsets = [0, 0], sizes = [8, 256], strides = [1, 1]} : vector<16x256xf32> to vector<8x256xf32>
    %121 = vector.extract_strided_slice %119 {offsets = [8, 0], sizes = [4, 256], strides = [1, 1]} : vector<16x256xf32> to vector<4x256xf32>
    %122 = arith.addf %111, %121 : vector<4x256xf32>
    %123 = vector.extract_strided_slice %69 {offsets = [8, 0], sizes = [16, 8], strides = [1, 1]} : vector<72x8xf32> to vector<16x8xf32>
    %cst_36 = arith.constant 0.000000e+00 : f32
    %124 = vector.broadcast %cst_36 : f32 to vector<8x256xf32>
    %125 = arith.subf %124, %24 : vector<8x256xf32>
    %126 = math.exp %125 : vector<8x256xf32>
    %cst_37 = arith.constant 1.000000e+00 : f32
    %127 = vector.broadcast %cst_37 : f32 to vector<8x256xf32>
    %128 = arith.subf %127, %126 : vector<8x256xf32>
    %129 = arith.mulf %120, %128 : vector<8x256xf32>
    %cst_38 = arith.constant dense<0.000000e+00> : vector<16x256xf32>
    %130 = tpu.matmul %123, %129, %cst_38 {dimension_numbers = #tpu.dot_dimension_numbers<[1], [0], [0], [1], [0, 0, 1, 1], [], []>} : vector<16x8xf32>, vector<8x256xf32>, vector<16x256xf32> -> vector<16x256xf32>
    %131 = vector.extract_strided_slice %130 {offsets = [0, 0], sizes = [8, 256], strides = [1, 1]} : vector<16x256xf32> to vector<8x256xf32>
    %132 = vector.extract_strided_slice %130 {offsets = [8, 0], sizes = [4, 256], strides = [1, 1]} : vector<16x256xf32> to vector<4x256xf32>
    %133 = arith.addf %122, %132 : vector<4x256xf32>
    %134 = vector.extract_strided_slice %69 {offsets = [0, 0], sizes = [8, 8], strides = [1, 1]} : vector<72x8xf32> to vector<8x8xf32>
    %cst_39 = arith.constant 0.000000e+00 : f32
    %135 = vector.broadcast %cst_39 : f32 to vector<8x256xf32>
    %136 = arith.subf %135, %12 : vector<8x256xf32>
    %137 = math.exp %136 : vector<8x256xf32>
    %cst_40 = arith.constant 1.000000e+00 : f32
    %138 = vector.broadcast %cst_40 : f32 to vector<8x256xf32>
    %139 = arith.subf %138, %137 : vector<8x256xf32>
    %140 = arith.mulf %131, %139 : vector<8x256xf32>
    %cst_41 = arith.constant dense<0.000000e+00> : vector<8x256xf32>
    %141 = tpu.matmul %134, %140, %cst_41 {dimension_numbers = #tpu.dot_dimension_numbers<[1], [0], [0], [1], [0, 0, 1, 1], [], []>} : vector<8x8xf32>, vector<8x256xf32>, vector<8x256xf32> -> vector<8x256xf32>
    %142 = vector.extract_strided_slice %141 {offsets = [0, 0], sizes = [4, 256], strides = [1, 1]} : vector<8x256xf32> to vector<4x256xf32>
    %143 = arith.addf %133, %142 : vector<4x256xf32>
    %c184 = arith.constant 184 : index
    %c0_42 = arith.constant 0 : index
    %144 = vector.load %arg2[%c184, %c0_42] : memref<368x8xf32, #tpu.memory_space<vmem>>, vector<24x5xf32>
    %cst_43 = arith.constant dense<0.000000e+00> : vector<24x256xf32>
    %145 = tpu.matmul %144, %0, %cst_43 {dimension_numbers = #tpu.dot_dimension_numbers<[1], [0], [0], [1], [0, 0, 1, 1], [], []>} : vector<24x5xf32>, vector<5x256xf32>, vector<24x256xf32> -> vector<24x256xf32>
    %146 = vector.extract_strided_slice %145 {offsets = [0, 0], sizes = [8, 256], strides = [1, 1]} : vector<24x256xf32> to vector<8x256xf32>
    %cst_44 = arith.constant 0.000000e+00 : f32
    %147 = vector.broadcast %cst_44 : f32 to vector<8x256xf32>
    %148 = arith.maximumf %146, %147 : vector<8x256xf32>
    %149 = math.absf %146 : vector<8x256xf32>
    %cst_45 = arith.constant 0.000000e+00 : f32
    %150 = vector.broadcast %cst_45 : f32 to vector<8x256xf32>
    %151 = arith.subf %150, %149 : vector<8x256xf32>
    %152 = math.exp %151 : vector<8x256xf32>
    %153 = math.log1p %152 : vector<8x256xf32>
    %154 = arith.addf %148, %153 : vector<8x256xf32>
    %155 = vector.extract_strided_slice %145 {offsets = [8, 0], sizes = [8, 256], strides = [1, 1]} : vector<24x256xf32> to vector<8x256xf32>
    %156 = vector.extract_strided_slice %145 {offsets = [16, 0], sizes = [4, 256], strides = [1, 1]} : vector<24x256xf32> to vector<4x256xf32>
    %c208 = arith.constant 208 : index
    %c0_46 = arith.constant 0 : index
    %157 = vector.load %arg2[%c208, %c0_46] : memref<368x8xf32, #tpu.memory_space<vmem>>, vector<32x8xf32>
    %cst_47 = arith.constant dense<0.000000e+00> : vector<32x256xf32>
    %158 = tpu.matmul %157, %154, %cst_47 {dimension_numbers = #tpu.dot_dimension_numbers<[1], [0], [0], [1], [0, 0, 1, 1], [], []>} : vector<32x8xf32>, vector<8x256xf32>, vector<32x256xf32> -> vector<32x256xf32>
    %c240 = arith.constant 240 : index
    %c0_48 = arith.constant 0 : index
    %159 = vector.load %arg2[%c240, %c0_48] : memref<368x8xf32, #tpu.memory_space<vmem>>, vector<32x1xf32>
    %160 = vector.broadcast %159 : vector<32x1xf32> to vector<32x256xf32>
    %161 = arith.addf %158, %160 : vector<32x256xf32>
    %162 = vector.extract_strided_slice %161 {offsets = [0, 0], sizes = [8, 256], strides = [1, 1]} : vector<32x256xf32> to vector<8x256xf32>
    %cst_49 = arith.constant 0.000000e+00 : f32
    %163 = vector.broadcast %cst_49 : f32 to vector<8x256xf32>
    %164 = arith.maximumf %162, %163 : vector<8x256xf32>
    %165 = math.absf %162 : vector<8x256xf32>
    %cst_50 = arith.constant 0.000000e+00 : f32
    %166 = vector.broadcast %cst_50 : f32 to vector<8x256xf32>
    %167 = arith.subf %166, %165 : vector<8x256xf32>
    %168 = math.exp %167 : vector<8x256xf32>
    %169 = math.log1p %168 : vector<8x256xf32>
    %170 = arith.addf %164, %169 : vector<8x256xf32>
    %171 = vector.extract_strided_slice %161 {offsets = [8, 0], sizes = [8, 256], strides = [1, 1]} : vector<32x256xf32> to vector<8x256xf32>
    %172 = vector.extract_strided_slice %161 {offsets = [16, 0], sizes = [8, 256], strides = [1, 1]} : vector<32x256xf32> to vector<8x256xf32>
    %cst_51 = arith.constant 0.000000e+00 : f32
    %173 = vector.broadcast %cst_51 : f32 to vector<8x256xf32>
    %174 = arith.maximumf %172, %173 : vector<8x256xf32>
    %175 = math.absf %172 : vector<8x256xf32>
    %cst_52 = arith.constant 0.000000e+00 : f32
    %176 = vector.broadcast %cst_52 : f32 to vector<8x256xf32>
    %177 = arith.subf %176, %175 : vector<8x256xf32>
    %178 = math.exp %177 : vector<8x256xf32>
    %179 = math.log1p %178 : vector<8x256xf32>
    %180 = arith.addf %174, %179 : vector<8x256xf32>
    %181 = vector.extract_strided_slice %161 {offsets = [24, 0], sizes = [4, 256], strides = [1, 1]} : vector<32x256xf32> to vector<4x256xf32>
    %c272 = arith.constant 272 : index
    %c0_53 = arith.constant 0 : index
    %182 = vector.load %arg2[%c272, %c0_53] : memref<368x8xf32, #tpu.memory_space<vmem>>, vector<24x8xf32>
    %cst_54 = arith.constant dense<0.000000e+00> : vector<24x256xf32>
    %183 = tpu.matmul %182, %170, %cst_54 {dimension_numbers = #tpu.dot_dimension_numbers<[1], [0], [0], [1], [0, 0, 1, 1], [], []>} : vector<24x8xf32>, vector<8x256xf32>, vector<24x256xf32> -> vector<24x256xf32>
    %c296 = arith.constant 296 : index
    %c0_55 = arith.constant 0 : index
    %184 = vector.load %arg2[%c296, %c0_55] : memref<368x8xf32, #tpu.memory_space<vmem>>, vector<24x1xf32>
    %185 = vector.broadcast %184 : vector<24x1xf32> to vector<24x256xf32>
    %186 = arith.addf %183, %185 : vector<24x256xf32>
    %187 = vector.extract_strided_slice %186 {offsets = [0, 0], sizes = [1, 256], strides = [1, 1]} : vector<24x256xf32> to vector<1x256xf32>
    %188 = vector.extract_strided_slice %186 {offsets = [8, 0], sizes = [8, 256], strides = [1, 1]} : vector<24x256xf32> to vector<8x256xf32>
    %cst_56 = arith.constant 0.000000e+00 : f32
    %189 = vector.broadcast %cst_56 : f32 to vector<8x256xf32>
    %190 = arith.maximumf %188, %189 : vector<8x256xf32>
    %191 = math.absf %188 : vector<8x256xf32>
    %cst_57 = arith.constant 0.000000e+00 : f32
    %192 = vector.broadcast %cst_57 : f32 to vector<8x256xf32>
    %193 = arith.subf %192, %191 : vector<8x256xf32>
    %194 = math.exp %193 : vector<8x256xf32>
    %195 = math.log1p %194 : vector<8x256xf32>
    %196 = arith.addf %190, %195 : vector<8x256xf32>
    %197 = vector.extract_strided_slice %186 {offsets = [16, 0], sizes = [4, 256], strides = [1, 1]} : vector<24x256xf32> to vector<4x256xf32>
    %c320 = arith.constant 320 : index
    %c0_58 = arith.constant 0 : index
    %198 = vector.load %arg2[%c320, %c0_58] : memref<368x8xf32, #tpu.memory_space<vmem>>, vector<8x4xf32>
    %c328 = arith.constant 328 : index
    %c0_59 = arith.constant 0 : index
    %199 = vector.load %arg2[%c328, %c0_59] : memref<368x8xf32, #tpu.memory_space<vmem>>, vector<8x8xf32>
    %c336 = arith.constant 336 : index
    %c0_60 = arith.constant 0 : index
    %200 = vector.load %arg2[%c336, %c0_60] : memref<368x8xf32, #tpu.memory_space<vmem>>, vector<8x4xf32>
    %c344 = arith.constant 344 : index
    %c0_61 = arith.constant 0 : index
    %201 = vector.load %arg2[%c344, %c0_61] : memref<368x8xf32, #tpu.memory_space<vmem>>, vector<16x8xf32>
    %c360 = arith.constant 360 : index
    %c0_62 = arith.constant 0 : index
    %202 = vector.load %arg2[%c360, %c0_62] : memref<368x8xf32, #tpu.memory_space<vmem>>, vector<8x8xf32>
    %c168 = arith.constant 168 : index
    %c0_63 = arith.constant 0 : index
    %203 = vector.load %arg2[%c168, %c0_63] : memref<368x8xf32, #tpu.memory_space<vmem>>, vector<8x1xf32>
    %c176 = arith.constant 176 : index
    %c0_64 = arith.constant 0 : index
    %204 = vector.load %arg2[%c176, %c0_64] : memref<368x8xf32, #tpu.memory_space<vmem>>, vector<8x1xf32>
    %205 = arith.mulf %143, %156 : vector<4x256xf32>
    %cst_65 = arith.constant dense<0.000000e+00> : vector<8x256xf32>
    %206 = tpu.matmul %198, %205, %cst_65 {dimension_numbers = #tpu.dot_dimension_numbers<[1], [0], [0], [1], [0, 0, 1, 1], [], []>} : vector<8x4xf32>, vector<4x256xf32>, vector<8x256xf32> -> vector<8x256xf32>
    %207 = arith.addf %155, %206 : vector<8x256xf32>
    %208 = math.absf %207 : vector<8x256xf32>
    %cst_66 = arith.constant 0.000000e+00 : f32
    %209 = vector.broadcast %cst_66 : f32 to vector<8x256xf32>
    %210 = arith.subf %209, %208 : vector<8x256xf32>
    %211 = math.exp %210 : vector<8x256xf32>
    %cst_67 = arith.constant 1.000000e+00 : f32
    %212 = vector.broadcast %cst_67 : f32 to vector<8x256xf32>
    %213 = arith.addf %212, %211 : vector<8x256xf32>
    %cst_68 = arith.constant 1.000000e+00 : f32
    %214 = vector.broadcast %cst_68 : f32 to vector<8x256xf32>
    %215 = arith.divf %214, %213 : vector<8x256xf32>
    %cst_69 = arith.constant 0.000000e+00 : f32
    %216 = vector.broadcast %cst_69 : f32 to vector<8x256xf32>
    %217 = arith.maximumf %207, %216 : vector<8x256xf32>
    %218 = math.log1p %211 : vector<8x256xf32>
    %219 = arith.addf %217, %218 : vector<8x256xf32>
    %cst_70 = arith.constant 0.000000e+00 : f32
    %220 = vector.broadcast %cst_70 : f32 to vector<8x256xf32>
    %221 = arith.cmpf oge, %207, %220 : vector<8x256xf32>
    %222 = arith.mulf %211, %215 : vector<8x256xf32>
    %223 = arith.select %221, %215, %222 : vector<8x256xi1>, vector<8x256xf32>
    %224 = arith.mulf %219, %180 : vector<8x256xf32>
    %cst_71 = arith.constant dense<0.000000e+00> : vector<8x256xf32>
    %225 = tpu.matmul %199, %224, %cst_71 {dimension_numbers = #tpu.dot_dimension_numbers<[1], [0], [0], [1], [0, 0, 1, 1], [], []>} : vector<8x8xf32>, vector<8x256xf32>, vector<8x256xf32> -> vector<8x256xf32>
    %226 = arith.addf %171, %225 : vector<8x256xf32>
    %227 = arith.mulf %143, %181 : vector<4x256xf32>
    %cst_72 = arith.constant dense<0.000000e+00> : vector<8x256xf32>
    %228 = tpu.matmul %200, %227, %cst_72 {dimension_numbers = #tpu.dot_dimension_numbers<[1], [0], [0], [1], [0, 0, 1, 1], [], []>} : vector<8x4xf32>, vector<4x256xf32>, vector<8x256xf32> -> vector<8x256xf32>
    %229 = arith.addf %226, %228 : vector<8x256xf32>
    %230 = math.absf %229 : vector<8x256xf32>
    %cst_73 = arith.constant 0.000000e+00 : f32
    %231 = vector.broadcast %cst_73 : f32 to vector<8x256xf32>
    %232 = arith.subf %231, %230 : vector<8x256xf32>
    %233 = math.exp %232 : vector<8x256xf32>
    %cst_74 = arith.constant 1.000000e+00 : f32
    %234 = vector.broadcast %cst_74 : f32 to vector<8x256xf32>
    %235 = arith.addf %234, %233 : vector<8x256xf32>
    %cst_75 = arith.constant 1.000000e+00 : f32
    %236 = vector.broadcast %cst_75 : f32 to vector<8x256xf32>
    %237 = arith.divf %236, %235 : vector<8x256xf32>
    %cst_76 = arith.constant 0.000000e+00 : f32
    %238 = vector.broadcast %cst_76 : f32 to vector<8x256xf32>
    %239 = arith.maximumf %229, %238 : vector<8x256xf32>
    %240 = math.log1p %233 : vector<8x256xf32>
    %241 = arith.addf %239, %240 : vector<8x256xf32>
    %cst_77 = arith.constant 0.000000e+00 : f32
    %242 = vector.broadcast %cst_77 : f32 to vector<8x256xf32>
    %243 = arith.cmpf oge, %229, %242 : vector<8x256xf32>
    %244 = arith.mulf %233, %237 : vector<8x256xf32>
    %245 = arith.select %243, %237, %244 : vector<8x256xi1>, vector<8x256xf32>
    %246 = arith.mulf %241, %196 : vector<8x256xf32>
    %247 = vector.broadcast %203 : vector<8x1xf32> to vector<8x256xf32>
    %248 = arith.mulf %247, %246 : vector<8x256xf32>
    %cst_78 = arith.constant dense<0.000000e+00> : vector<256xf32>
    %249 = vector.multi_reduction <add>, %248, %cst_78 [0] : vector<8x256xf32> to vector<256xf32>
    %250 = vector.shape_cast %249 : vector<256xf32> to vector<1x256xf32>
    %251 = arith.addf %187, %250 : vector<1x256xf32>
    %252 = vector.extract_strided_slice %204 {offsets = [0, 0], sizes = [4, 1], strides = [1, 1]} : vector<8x1xf32> to vector<4x1xf32>
    %253 = arith.mulf %143, %197 : vector<4x256xf32>
    %254 = vector.broadcast %252 : vector<4x1xf32> to vector<4x256xf32>
    %255 = arith.mulf %254, %253 : vector<4x256xf32>
    %cst_79 = arith.constant dense<0.000000e+00> : vector<256xf32>
    %256 = vector.multi_reduction <add>, %255, %cst_79 [0] : vector<4x256xf32> to vector<256xf32>
    %257 = vector.shape_cast %256 : vector<256xf32> to vector<1x256xf32>
    %258 = arith.addf %251, %257 : vector<1x256xf32>
    %259 = math.absf %258 : vector<1x256xf32>
    %cst_80 = arith.constant 0.000000e+00 : f32
    %260 = vector.broadcast %cst_80 : f32 to vector<1x256xf32>
    %261 = arith.subf %260, %259 : vector<1x256xf32>
    %262 = math.exp %261 : vector<1x256xf32>
    %cst_81 = arith.constant 0.000000e+00 : f32
    %263 = vector.broadcast %cst_81 : f32 to vector<1x256xf32>
    %264 = arith.cmpf oge, %258, %263 : vector<1x256xf32>
    %cst_82 = arith.constant 1.000000e+00 : f32
    %265 = vector.broadcast %cst_82 : f32 to vector<1x256xf32>
    %266 = arith.select %264, %265, %262 : vector<1x256xi1>, vector<1x256xf32>
    %cst_83 = arith.constant 1.000000e+00 : f32
    %267 = vector.broadcast %cst_83 : f32 to vector<1x256xf32>
    %268 = arith.addf %267, %262 : vector<1x256xf32>
    %269 = arith.divf %266, %268 : vector<1x256xf32>
    %270 = vector.extract_strided_slice %204 {offsets = [0, 0], sizes = [4, 1], strides = [1, 1]} : vector<8x1xf32> to vector<4x1xf32>
    %271 = vector.broadcast %270 : vector<4x1xf32> to vector<4x256xf32>
    %272 = vector.broadcast %269 : vector<1x256xf32> to vector<4x256xf32>
    %273 = arith.mulf %271, %272 : vector<4x256xf32>
    %274 = arith.mulf %273, %197 : vector<4x256xf32>
    %275 = vector.broadcast %203 : vector<8x1xf32> to vector<8x256xf32>
    %276 = vector.broadcast %269 : vector<1x256xf32> to vector<8x256xf32>
    %277 = arith.mulf %275, %276 : vector<8x256xf32>
    %278 = arith.mulf %277, %196 : vector<8x256xf32>
    %279 = arith.mulf %278, %245 : vector<8x256xf32>
    %cst_84 = arith.constant dense<0.000000e+00> : vector<16x256xf32>
    %280 = tpu.matmul %201, %279, %cst_84 {dimension_numbers = #tpu.dot_dimension_numbers<[1], [0], [0], [1], [0, 0, 1, 1], [], []>} : vector<16x8xf32>, vector<8x256xf32>, vector<16x256xf32> -> vector<16x256xf32>
    %281 = vector.extract_strided_slice %280 {offsets = [8, 0], sizes = [4, 256], strides = [1, 1]} : vector<16x256xf32> to vector<4x256xf32>
    %282 = arith.mulf %281, %181 : vector<4x256xf32>
    %283 = arith.addf %274, %282 : vector<4x256xf32>
    %284 = vector.extract_strided_slice %280 {offsets = [0, 0], sizes = [8, 256], strides = [1, 1]} : vector<16x256xf32> to vector<8x256xf32>
    %285 = arith.mulf %284, %180 : vector<8x256xf32>
    %286 = arith.mulf %285, %223 : vector<8x256xf32>
    %cst_85 = arith.constant dense<0.000000e+00> : vector<8x256xf32>
    %287 = tpu.matmul %202, %286, %cst_85 {dimension_numbers = #tpu.dot_dimension_numbers<[1], [0], [0], [1], [0, 0, 1, 1], [], []>} : vector<8x8xf32>, vector<8x256xf32>, vector<8x256xf32> -> vector<8x256xf32>
    %288 = vector.extract_strided_slice %287 {offsets = [0, 0], sizes = [4, 256], strides = [1, 1]} : vector<8x256xf32> to vector<4x256xf32>
    %289 = arith.mulf %288, %156 : vector<4x256xf32>
    %290 = arith.addf %283, %289 : vector<4x256xf32>
    %291 = math.absf %155 : vector<8x256xf32>
    %cst_86 = arith.constant 0.000000e+00 : f32
    %292 = vector.broadcast %cst_86 : f32 to vector<8x256xf32>
    %293 = arith.subf %292, %291 : vector<8x256xf32>
    %294 = math.exp %293 : vector<8x256xf32>
    %cst_87 = arith.constant 1.000000e+00 : f32
    %295 = vector.broadcast %cst_87 : f32 to vector<8x256xf32>
    %296 = arith.addf %295, %294 : vector<8x256xf32>
    %cst_88 = arith.constant 1.000000e+00 : f32
    %297 = vector.broadcast %cst_88 : f32 to vector<8x256xf32>
    %298 = arith.divf %297, %296 : vector<8x256xf32>
    %cst_89 = arith.constant 0.000000e+00 : f32
    %299 = vector.broadcast %cst_89 : f32 to vector<8x256xf32>
    %300 = arith.maximumf %155, %299 : vector<8x256xf32>
    %301 = math.log1p %294 : vector<8x256xf32>
    %302 = arith.addf %300, %301 : vector<8x256xf32>
    %cst_90 = arith.constant 0.000000e+00 : f32
    %303 = vector.broadcast %cst_90 : f32 to vector<8x256xf32>
    %304 = arith.cmpf oge, %155, %303 : vector<8x256xf32>
    %305 = arith.mulf %294, %298 : vector<8x256xf32>
    %306 = arith.select %304, %298, %305 : vector<8x256xi1>, vector<8x256xf32>
    %307 = arith.mulf %302, %180 : vector<8x256xf32>
    %cst_91 = arith.constant dense<0.000000e+00> : vector<8x256xf32>
    %308 = tpu.matmul %199, %307, %cst_91 {dimension_numbers = #tpu.dot_dimension_numbers<[1], [0], [0], [1], [0, 0, 1, 1], [], []>} : vector<8x8xf32>, vector<8x256xf32>, vector<8x256xf32> -> vector<8x256xf32>
    %309 = arith.addf %171, %308 : vector<8x256xf32>
    %310 = math.absf %309 : vector<8x256xf32>
    %cst_92 = arith.constant 0.000000e+00 : f32
    %311 = vector.broadcast %cst_92 : f32 to vector<8x256xf32>
    %312 = arith.subf %311, %310 : vector<8x256xf32>
    %313 = math.exp %312 : vector<8x256xf32>
    %cst_93 = arith.constant 1.000000e+00 : f32
    %314 = vector.broadcast %cst_93 : f32 to vector<8x256xf32>
    %315 = arith.addf %314, %313 : vector<8x256xf32>
    %cst_94 = arith.constant 1.000000e+00 : f32
    %316 = vector.broadcast %cst_94 : f32 to vector<8x256xf32>
    %317 = arith.divf %316, %315 : vector<8x256xf32>
    %cst_95 = arith.constant 0.000000e+00 : f32
    %318 = vector.broadcast %cst_95 : f32 to vector<8x256xf32>
    %319 = arith.maximumf %309, %318 : vector<8x256xf32>
    %320 = math.log1p %313 : vector<8x256xf32>
    %321 = arith.addf %319, %320 : vector<8x256xf32>
    %cst_96 = arith.constant 0.000000e+00 : f32
    %322 = vector.broadcast %cst_96 : f32 to vector<8x256xf32>
    %323 = arith.cmpf oge, %309, %322 : vector<8x256xf32>
    %324 = arith.mulf %313, %317 : vector<8x256xf32>
    %325 = arith.select %323, %317, %324 : vector<8x256xi1>, vector<8x256xf32>
    %326 = arith.mulf %321, %196 : vector<8x256xf32>
    %327 = vector.broadcast %203 : vector<8x1xf32> to vector<8x256xf32>
    %328 = arith.mulf %327, %326 : vector<8x256xf32>
    %cst_97 = arith.constant dense<0.000000e+00> : vector<256xf32>
    %329 = vector.multi_reduction <add>, %328, %cst_97 [0] : vector<8x256xf32> to vector<256xf32>
    %330 = vector.shape_cast %329 : vector<256xf32> to vector<1x256xf32>
    %331 = arith.addf %187, %330 : vector<1x256xf32>
    %332 = math.absf %331 : vector<1x256xf32>
    %cst_98 = arith.constant 0.000000e+00 : f32
    %333 = vector.broadcast %cst_98 : f32 to vector<1x256xf32>
    %334 = arith.subf %333, %332 : vector<1x256xf32>
    %335 = math.exp %334 : vector<1x256xf32>
    %cst_99 = arith.constant 0.000000e+00 : f32
    %336 = vector.broadcast %cst_99 : f32 to vector<1x256xf32>
    %337 = arith.cmpf oge, %331, %336 : vector<1x256xf32>
    %cst_100 = arith.constant 1.000000e+00 : f32
    %338 = vector.broadcast %cst_100 : f32 to vector<1x256xf32>
    %339 = arith.select %337, %338, %335 : vector<1x256xi1>, vector<1x256xf32>
    %cst_101 = arith.constant 1.000000e+00 : f32
    %340 = vector.broadcast %cst_101 : f32 to vector<1x256xf32>
    %341 = arith.addf %340, %335 : vector<1x256xf32>
    %342 = arith.divf %339, %341 : vector<1x256xf32>
    %343 = vector.extract_strided_slice %204 {offsets = [0, 0], sizes = [4, 1], strides = [1, 1]} : vector<8x1xf32> to vector<4x1xf32>
    %344 = vector.broadcast %343 : vector<4x1xf32> to vector<4x256xf32>
    %345 = vector.broadcast %342 : vector<1x256xf32> to vector<4x256xf32>
    %346 = arith.mulf %344, %345 : vector<4x256xf32>
    %347 = arith.mulf %346, %197 : vector<4x256xf32>
    %348 = vector.broadcast %203 : vector<8x1xf32> to vector<8x256xf32>
    %349 = vector.broadcast %342 : vector<1x256xf32> to vector<8x256xf32>
    %350 = arith.mulf %348, %349 : vector<8x256xf32>
    %351 = arith.mulf %350, %196 : vector<8x256xf32>
    %352 = arith.mulf %351, %325 : vector<8x256xf32>
    %cst_102 = arith.constant dense<0.000000e+00> : vector<16x256xf32>
    %353 = tpu.matmul %201, %352, %cst_102 {dimension_numbers = #tpu.dot_dimension_numbers<[1], [0], [0], [1], [0, 0, 1, 1], [], []>} : vector<16x8xf32>, vector<8x256xf32>, vector<16x256xf32> -> vector<16x256xf32>
    %354 = vector.extract_strided_slice %353 {offsets = [8, 0], sizes = [4, 256], strides = [1, 1]} : vector<16x256xf32> to vector<4x256xf32>
    %355 = arith.mulf %354, %181 : vector<4x256xf32>
    %356 = arith.addf %347, %355 : vector<4x256xf32>
    %357 = vector.extract_strided_slice %353 {offsets = [0, 0], sizes = [8, 256], strides = [1, 1]} : vector<16x256xf32> to vector<8x256xf32>
    %358 = arith.mulf %357, %180 : vector<8x256xf32>
    %359 = arith.mulf %358, %306 : vector<8x256xf32>
    %cst_103 = arith.constant dense<0.000000e+00> : vector<8x256xf32>
    %360 = tpu.matmul %202, %359, %cst_103 {dimension_numbers = #tpu.dot_dimension_numbers<[1], [0], [0], [1], [0, 0, 1, 1], [], []>} : vector<8x8xf32>, vector<8x256xf32>, vector<8x256xf32> -> vector<8x256xf32>
    %361 = vector.extract_strided_slice %360 {offsets = [0, 0], sizes = [4, 256], strides = [1, 1]} : vector<8x256xf32> to vector<4x256xf32>
    %362 = arith.mulf %361, %156 : vector<4x256xf32>
    %363 = arith.addf %356, %362 : vector<4x256xf32>
    %364 = arith.subf %290, %363 : vector<4x256xf32>
    %c0_104 = arith.constant 0 : index
    %c0_105 = arith.constant 0 : index
    %365 = vector.load %arg3[%c0_104, %c0_105] : memref<4x256xf32, #tpu.memory_space<vmem>>, vector<4x256xf32>
    tpu.vector_store %arg3[%c0_104, %c0_105], %364 {strides = array<i32>} : memref<4x256xf32, #tpu.memory_space<vmem>>, vector<4x256xf32>,
    return
  }
  func.func @transform_0(%arg0: i32) -> (i32, i32) {
    %c0_i32 = arith.constant 0 : i32
    %c0_i32_0 = arith.constant 0 : i32
    return %c0_i32, %arg0 : i32, i32
  }
  func.func @transform_1(%arg0: i32) -> (i32, i32) {
    %c0_i32 = arith.constant 0 : i32
    %c0_i32_0 = arith.constant 0 : i32
    %c0_i32_1 = arith.constant 0 : i32
    return %c0_i32, %c0_i32_0 : i32, i32
  }
  func.func @transform_2(%arg0: i32) -> (i32, i32) {
    %c0_i32 = arith.constant 0 : i32
    %c0_i32_0 = arith.constant 0 : i32
    return %c0_i32, %arg0 : i32, i32
  }
}

</mosaic_0001>

<llo_original>
// kernel: gradient_dynamics_forward.1
$region0: #{gradient_dynamics_forward.1}
  #allocation0 [shape = 'u32[]', space=smem, size = 0x4, offset = 0x4, fixed_abs, tag = 'smem constant byte address 0x4 - core index']
  #allocation1 [shape = 'u32[72,128]{1,0:T(1,128)}', space=vmem, size = 0x9000, scoped, tag = 'internal scratch']
  %s0 = inlined_call_operand.vmem [shape: f32[5,512], index: 0, kind: input, shape index: {}]
  %s1 = inlined_call_operand.vmem [shape: f32[368,8], index: 1, kind: input, shape index: {}]
  %s2 = inlined_call_operand.hbm [shape: f32[4,512], index: 2, kind: output, shape index: {}]
  %s3 = sld [smem:[#allocation0]]
  $region41: #{gradient_dynamics_forward.1} parent=0
    _
  %s5 = ssub.s32 1, %s3
  %s6 = scalar_select 0, %s5, %s3
  $region1: #{gradient_dynamics_forward.1} parent=0
    #allocation2 [shape = 'u8[8192]{0}', space=vmem, size = 0x2000, scoped, tag = 'output window, operand 0']
    #allocation3 [shape = 's32[2]{0}', space=sflag, size = 0x8, scoped, tag = 'scoped memory for gradient_dynamics_forward.1']
    %7 = vsyncpa [#allocation3], 0
    %s8 = scalar_lea.sflag [#allocation3], 1
    %9 = vsyncpa %s8, 0
    loop: start=0, step=1, limit=4
    $region2: #{gradient_dynamics_forward.1} parent=1 // loop_pre_header
      _
    $region3: #{gradient_dynamics_forward.1} parent=1 // loop_header
      %s11 = sphi 0, %s15
      %p12 = scmp.ge.s32.totalorder %s11, 4
      %s21 = sphi 0, %s23
      %s24 = sphi 0, %s21
      %s25 = sphi 0, %s24
      %s41 = sphi 0, %s25
      %s45 = sphi 0, %s45
      %s47 = sphi 0, %s45
      %s48 = sphi 0, %s47
      %s62 = sphi 0, %s48
      %s68 = sphi 0, %s70
      %s71 = sphi 0, %s68
      %s72 = sphi 0, %s71
      %s88 = sphi 0, %s72
    $region4: #{gradient_dynamics_forward.1} parent=1 // loop_header_branch
      %14 = sbr.rel (%p12) target = $region8
    $region5: #{gradient_dynamics_forward.1} parent=1 // loop_body
      %s16 = ssub.s32 %s11, 1
      %s17 = ssub.s32 %s11, 2
      %s18 = sadd.s32 %s11, 1
      %s19 = ssub.s32 %s11, %s18
      %p20 = scmp.eq.s32.totalorder %s19, 0
      %s22 = sadd.s32 %s21, 1
      %s23 = scalar_select %p20, %s21, %s22
      %p26 = pneg %p20
      %p27 = scmp.eq.s32.totalorder %s11, 1
      %p28 = por %p26, %p27
      %p29 = scmp.ne.s32.totalorder %s21, %s24
      %p30 = scmp.eq.s32.totalorder %s11, 0
      %p31 = por %p29, %p30
      %p32 = scmp.ne.s32.totalorder %s21, %s24
      %p33 = scmp.eq.s32.totalorder %s16, 1
      %p34 = por %p32, %p33
      %p35 = scmp.ne.s32.totalorder %s24, %s25
      %p36 = scmp.eq.s32.totalorder %s16, 0
      %p37 = por %p35, %p36
      %p38 = scmp.ne.s32.totalorder %s24, %s25
      %p39 = scmp.eq.s32.totalorder %s17, 1
      %p40 = por %p38, %p39
      %p42 = scmp.ne.s32.totalorder %s25, %s41
      %p43 = scmp.eq.s32.totalorder %s17, 0
      %p44 = por %p42, %p43
      %s46 = sadd.s32 %s45, 1
      %p49 = scmp.eq.s32.totalorder %s11, 1
      %p50 = scmp.ne.s32.totalorder %s45, %s47
      %p51 = scmp.eq.s32.totalorder %s11, 0
      %p52 = por %p50, %p51
      %p53 = scmp.ne.s32.totalorder %s45, %s47
      %p54 = scmp.eq.s32.totalorder %s16, 1
      %p55 = por %p53, %p54
      %p56 = scmp.ne.s32.totalorder %s47, %s48
      %p57 = scmp.eq.s32.totalorder %s16, 0
      %p58 = por %p56, %p57
      %p59 = scmp.ne.s32.totalorder %s47, %s48
      %p60 = scmp.eq.s32.totalorder %s17, 1
      %p61 = por %p59, %p60
      %p63 = scmp.ne.s32.totalorder %s48, %s62
      %p64 = scmp.eq.s32.totalorder %s17, 0
      %p65 = por %p63, %p64
      %s66 = ssub.s32 %s11, %s18
      %p67 = scmp.eq.s32.totalorder %s66, 0
      %s69 = sadd.s32 %s68, 1
      %s70 = scalar_select %p67, %s68, %s69
      %p73 = pneg %p67
      %p74 = scmp.eq.s32.totalorder %s11, 1
      %p75 = por %p73, %p74
      %p76 = scmp.ne.s32.totalorder %s68, %s71
      %p77 = scmp.eq.s32.totalorder %s11, 0
      %p78 = por %p76, %p77
      %p79 = scmp.ne.s32.totalorder %s68, %s71
      %p80 = scmp.eq.s32.totalorder %s16, 1
      %p81 = por %p79, %p80
      %p82 = scmp.ne.s32.totalorder %s71, %s72
      %p83 = scmp.eq.s32.totalorder %s16, 0
      %p84 = por %p82, %p83
      %p85 = scmp.ne.s32.totalorder %s71, %s72
      %p86 = scmp.eq.s32.totalorder %s17, 1
      %p87 = por %p85, %p86
      %p89 = scmp.ne.s32.totalorder %s72, %s88
      %p90 = scmp.eq.s32.totalorder %s17, 0
      %p91 = por %p89, %p90
      %p92 = scmp.le.s32.totalorder 1, %s11
      %p93 = scmp.lt.s32.totalorder %s11, 3
      %p94 = pnand %p92, %p93
      %p95 = pneg %p94
      // Predicated region
      $region9: #{gradient_dynamics_forward.1} parent=5 // pred_check
        _
      $region10: #{gradient_dynamics_forward.1} parent=5 // pred_check_branch
        %97 = sbr.rel (%p94) target = $region12
      $region11: #{gradient_dynamics_forward.1} parent=5 // pred_region
        %s98 = ssub.s32 %s11, 1
        // Predicated region
        $region13: #{gradient_dynamics_forward.1} parent=11 // pred_check
          %p99 = pneg %p58
        $region14: #{gradient_dynamics_forward.1} parent=11 // pred_check_branch
          %101 = sbr.rel (%p99) target = $region16
        $region15: #{gradient_dynamics_forward.1} parent=11 // pred_region
          _
        $region16: #{gradient_dynamics_forward.1} parent=11 // pred_fallthru
          _
      $region12: #{gradient_dynamics_forward.1} parent=5 // pred_fallthru
        _
      %p102 = scmp.lt.s32.totalorder %s11, 2
      // Predicated region
      $region17: #{gradient_dynamics_forward.1} parent=5 // pred_check
        %p103 = pneg %p102
      $region18: #{gradient_dynamics_forward.1} parent=5 // pred_check_branch
        %105 = sbr.rel (%p103) target = $region20
      $region19: #{gradient_dynamics_forward.1} parent=5 // pred_region
        // Predicated region
        $region21: #{gradient_dynamics_forward.1} parent=19 // pred_check
          %p106 = pneg %p31
        $region22: #{gradient_dynamics_forward.1} parent=19 // pred_check_branch
          %108 = sbr.rel (%p106) target = $region24
        $region23: #{gradient_dynamics_forward.1} parent=19 // pred_region
          %s109 = smul.u32 2, %s11
          %p110 = scmp.lt.s32.totalorder %s109, 3
          %s111 = scalar_select %p110, %s109, 3
          %s112 = smul.addr %s111, 8
          %s113 = scalar_lea.vmem %s0, %s112
          %s114 = smul.u32 2, %s11
        $region24: #{gradient_dynamics_forward.1} parent=19 // pred_fallthru
          _
      $region20: #{gradient_dynamics_forward.1} parent=5 // pred_fallthru
        _
      %p115 = scmp.le.s32.totalorder 1, %s11
      %p116 = scmp.lt.s32.totalorder %s11, 3
      %p117 = pnand %p115, %p116
      %p118 = pneg %p117
      // Predicated region
      $region25: #{gradient_dynamics_forward.1} parent=5 // pred_check
        _
      $region26: #{gradient_dynamics_forward.1} parent=5 // pred_check_branch
        %120 = sbr.rel (%p117) target = $region28
      $region27: #{gradient_dynamics_forward.1} parent=5 // pred_region
        %s121 = ssub.s32 %s11, 1
        %s122 = smul.u32 2, %s16
        %p123 = scmp.lt.s32.totalorder %s122, 3
        %s124 = scalar_select %p123, %s122, 3
        %s125 = smul.addr %s124, 8
        %s126 = scalar_lea.vmem %s0, %s125
        %p127 = pneg %p37
        %p128 = pneg %p34
        %p129 = pneg %p58
        %p130 = pneg %p55
        %p131 = pneg %p84
        %p132 = pneg %p81
        %s133 = sand.u32 %s71, 1
        %s134 = scalar_lea.sflag [#allocation3], %s133
        %s135 = sand.u32 %s71, 1
        %s136 = smul.addr %s135, 8
        %s137 = scalar_lea.vmem [#allocation2], %s136
        %s138 = smul.u32 2, %s16
        %p139 = scmp.lt.s32.totalorder %s138, 3
        %s140 = scalar_select %p139, %s138, 3
        %s141 = smul.addr %s140, 8
        %s142 = scalar_lea.vmem %s0, %s141
        %s143 = smul.u32 2, %s16
        %s144 = smul.u32 2, %s16
        %v145 = vld [vmem:[%s142] sm:$0x1f]
        %v146 = vld [vmem:[%s142 + $0x8] sm:$0x1f]
        %v147 = vld [vmem:[%s1] sm:$0xff]
        %v148 = vld [vmem:[%s1 + $0x8] sm:$0xff]
        %v149 = vld [vmem:[%s1 + $0x10] sm:$0xff]
        %v150 = vld [vmem:[%s1 + $0x18] sm:$0xff]
        %v151 = vld [vmem:[%s1 + $0x20] sm:$0xff]
        %v152 = vld [vmem:[%s1 + $0x28] sm:$0xff]
        %vm153 = vcmask 39936
        %v155 = vsel %vm153, %v147, 0
        %v158 = vsel %vm153, %v148, 0
        %v161 = vsel %vm153, %v149, 0
        %v164 = vsel %vm153, %v150, 0
        %v167 = vsel %vm153, %v151, 0
        %v170 = vsel %vm153, %v152, 0
        %vm172 = vcmask 1044480
        %v174 = vsel %vm172, %v145, 0
        %v177 = vsel %vm172, %v146, 0
        %179 = vmatpush.msra.mxu0 0.0
        %180 = vmatpush.msra.mxu0 0.0
        %181 = vmatpush.msra.mxu0 0.0
        %182 = vmatpush.msra.mxu0 0.0
        %183 = vmatpush.msra.mxu0 0.0
        %184 = vmatpush.msra.mxu0 0.0
        %185 = vmatpush.msra.mxu0 0.0
        %186 = vmatpush.msra.mxu0 0.0
        %187 = vmatpush.msra.mxu0 0.0
        %188 = vmatpush.msra.mxu0 0.0
        %189 = vmatpush.msra.mxu0 0.0
        %190 = vmatpush.msra.mxu0 0.0
        %191 = vmatpush.msra.mxu0 0.0
        %192 = vmatpush.msra.mxu0 0.0
        %193 = vmatpush.msra.mxu0 0.0
        %194 = vmatpush.msra.mxu0 %v174
        %195 = vmatmul.f32.gmra.mxu0 %v155
        %v196 = vpop.f32.mrf.mxu0
        %v197 = vadd.f32 0.0, %v196
        %198 = vmatmul.f32.gmra.mxu0 %v158
        %v199 = vpop.f32.mrf.mxu0
        %v200 = vadd.f32 0.0, %v199
        %201 = vmatmul.f32.gmra.mxu0 %v161
        %v202 = vpop.f32.mrf.mxu0
        %v203 = vadd.f32 0.0, %v202
        %204 = vmatmul.f32.gmra.mxu0 %v164
        %v205 = vpop.f32.mrf.mxu0
        %v206 = vadd.f32 0.0, %v205
        %207 = vmatmul.f32.gmra.mxu0 %v167
        %v208 = vpop.f32.mrf.mxu0
        %v209 = vadd.f32 0.0, %v208
        %210 = vmatmul.f32.gmra.mxu0 %v170
        %v211 = vpop.f32.mrf.mxu0
        %v212 = vadd.f32 0.0, %v211
        %213 = vdwg.mxu0
        %214 = vmatpush.msra.mxu0 0.0
        %215 = vmatpush.msra.mxu0 0.0
        %216 = vmatpush.msra.mxu0 0.0
        %217 = vmatpush.msra.mxu0 0.0
        %218 = vmatpush.msra.mxu0 0.0
        %219 = vmatpush.msra.mxu0 0.0
        %220 = vmatpush.msra.mxu0 0.0
        %221 = vmatpush.msra.mxu0 0.0
        %222 = vmatpush.msra.mxu0 0.0
        %223 = vmatpush.msra.mxu0 0.0
        %224 = vmatpush.msra.mxu0 0.0
        %225 = vmatpush.msra.mxu0 0.0
        %226 = vmatpush.msra.mxu0 0.0
        %227 = vmatpush.msra.mxu0 0.0
        %228 = vmatpush.msra.mxu0 0.0
        %229 = vmatpush.msra.mxu0 %v177
        %230 = vmatmul.f32.gmra.mxu0 %v155
        %v231 = vpop.f32.mrf.mxu0
        %v232 = vadd.f32 0.0, %v231
        %233 = vmatmul.f32.gmra.mxu0 %v158
        %v234 = vpop.f32.mrf.mxu0
        %v235 = vadd.f32 0.0, %v234
        %236 = vmatmul.f32.gmra.mxu0 %v161
        %v237 = vpop.f32.mrf.mxu0
        %v238 = vadd.f32 0.0, %v237
        %239 = vmatmul.f32.gmra.mxu0 %v164
        %v240 = vpop.f32.mrf.mxu0
        %v241 = vadd.f32 0.0, %v240
        %242 = vmatmul.f32.gmra.mxu0 %v167
        %v243 = vpop.f32.mrf.mxu0
        %v244 = vadd.f32 0.0, %v243
        %245 = vmatmul.f32.gmra.mxu0 %v170
        %v246 = vpop.f32.mrf.mxu0
        %v247 = vadd.f32 0.0, %v246
        %248 = vdwg.mxu0
        %v249 = vld [vmem:[%s1 + $0x30] sm:$0xff]
        %v250 = vld [vmem:[%s1 + $0x38] sm:$0xff]
        %v251 = vld [vmem:[%s1 + $0x40] sm:$0xff]
        %v252 = vld [vmem:[%s1 + $0x48] sm:$0xff]
        %v253 = vmax.f32 %v197, 0.0
        %v254 = vmax.f32 %v232, 0.0
        %v255 = vand.u32 2147483647, %v197
        %v256 = vand.u32 2147483647, %v232
        %v257 = vsub.f32 0.0, %v255
        %v258 = vsub.f32 0.0, %v256
        %v259 = vmul.f32 %v257, 1.442695
        %v260 = vpow.pop %v259
        %v261 = vmul.f32 %v258, 1.442695
        %v262 = vpow.pop %v261
        %v263 = vadd.f32 %v260, 1.0
        %v264 = vlog2.pop %v263
        %v265 = vmul.f32 %v264, 0.6931472
        %v266 = vmul.f32 -0.5, %v260
        %v267 = vadd.f32 %v266, 1.0
        %v268 = vmul.f32 %v267, %v260
        %v269 = vand.u32 2147483647, %v260
        %vm270 = vcmp.lt.f32.partialorder %v269, 0.0004427343
        %v271 = vsel %vm270, %v268, %v265
        %v272 = vadd.f32 %v262, 1.0
        %v273 = vlog2.pop %v272
        %v274 = vmul.f32 %v273, 0.6931472
        %v275 = vmul.f32 -0.5, %v262
        %v276 = vadd.f32 %v275, 1.0
        %v277 = vmul.f32 %v276, %v262
        %v278 = vand.u32 2147483647, %v262
        %vm279 = vcmp.lt.f32.partialorder %v278, 0.0004427343
        %v280 = vsel %vm279, %v277, %v274
        %v281 = vadd.f32 %v253, %v271
        %v282 = vadd.f32 %v254, %v280
        %vm283 = vcmask 64512
        %v285 = vsel %vm283, %v249, 0
        %287 = vmatpush.msra.mxu0 0.0
        %288 = vmatpush.msra.mxu0 0.0
        %289 = vmatpush.msra.mxu0 0.0
        %290 = vmatpush.msra.mxu0 0.0
        %291 = vmatpush.msra.mxu0 0.0
        %292 = vmatpush.msra.mxu0 0.0
        %293 = vmatpush.msra.mxu0 0.0
        %294 = vmatpush.msra.mxu0 0.0
        %295 = vmatpush.msra.mxu0 0.0
        %296 = vmatpush.msra.mxu0 0.0
        %297 = vmatpush.msra.mxu0 0.0
        %298 = vmatpush.msra.mxu0 0.0
        %299 = vmatpush.msra.mxu0 0.0
        %300 = vmatpush.msra.mxu0 0.0
        %301 = vmatpush.msra.mxu0 0.0
        %302 = vmatpush.msra.mxu0 %v281
        %303 = vmatmul.f32.gmra.mxu0 %v285
        %v304 = vpop.f32.mrf.mxu0
        %v305 = vadd.f32 %v200, %v304
        %306 = vdwg.mxu0
        %307 = vmatpush.msra.mxu0 0.0
        %308 = vmatpush.msra.mxu0 0.0
        %309 = vmatpush.msra.mxu0 0.0
        %310 = vmatpush.msra.mxu0 0.0
        %311 = vmatpush.msra.mxu0 0.0
        %312 = vmatpush.msra.mxu0 0.0
        %313 = vmatpush.msra.mxu0 0.0
        %314 = vmatpush.msra.mxu0 0.0
        %315 = vmatpush.msra.mxu0 0.0
        %316 = vmatpush.msra.mxu0 0.0
        %317 = vmatpush.msra.mxu0 0.0
        %318 = vmatpush.msra.mxu0 0.0
        %319 = vmatpush.msra.mxu0 0.0
        %320 = vmatpush.msra.mxu0 0.0
        %321 = vmatpush.msra.mxu0 0.0
        %322 = vmatpush.msra.mxu0 %v282
        %323 = vmatmul.f32.gmra.mxu0 %v285
        %v324 = vpop.f32.mrf.mxu0
        %v325 = vadd.f32 %v235, %v324
        %326 = vdwg.mxu0
        %v327 = vmax.f32 %v305, 0.0
        %v328 = vmax.f32 %v325, 0.0
        %v329 = vand.u32 2147483647, %v305
        %v330 = vand.u32 2147483647, %v325
        %v331 = vsub.f32 0.0, %v329
        %v332 = vsub.f32 0.0, %v330
        %v333 = vmul.f32 %v331, 1.442695
        %v334 = vpow.pop %v333
        %v335 = vmul.f32 %v332, 1.442695
        %v336 = vpow.pop %v335
        %v337 = vadd.f32 %v334, 1.0
        %v338 = vlog2.pop %v337
        %v339 = vmul.f32 %v338, 0.6931472
        %v340 = vmul.f32 -0.5, %v334
        %v341 = vadd.f32 %v340, 1.0
        %v342 = vmul.f32 %v341, %v334
        %v343 = vand.u32 2147483647, %v334
        %vm344 = vcmp.lt.f32.partialorder %v343, 0.0004427343
        %v345 = vsel %vm344, %v342, %v339
        %v346 = vadd.f32 %v336, 1.0
        %v347 = vlog2.pop %v346
        %v348 = vmul.f32 %v347, 0.6931472
        %v349 = vmul.f32 -0.5, %v336
        %v350 = vadd.f32 %v349, 1.0
        %v351 = vmul.f32 %v350, %v336
        %v352 = vand.u32 2147483647, %v336
        %vm353 = vcmp.lt.f32.partialorder %v352, 0.0004427343
        %v354 = vsel %vm353, %v351, %v348
        %v355 = vadd.f32 %v327, %v345
        %v356 = vadd.f32 %v328, %v354
        %v358 = vsel %vm283, %v250, 0
        %360 = vmatpush.msra.mxu0 0.0
        %361 = vmatpush.msra.mxu0 0.0
        %362 = vmatpush.msra.mxu0 0.0
        %363 = vmatpush.msra.mxu0 0.0
        %364 = vmatpush.msra.mxu0 0.0
        %365 = vmatpush.msra.mxu0 0.0
        %366 = vmatpush.msra.mxu0 0.0
        %367 = vmatpush.msra.mxu0 0.0
        %368 = vmatpush.msra.mxu0 0.0
        %369 = vmatpush.msra.mxu0 0.0
        %370 = vmatpush.msra.mxu0 0.0
        %371 = vmatpush.msra.mxu0 0.0
        %372 = vmatpush.msra.mxu0 0.0
        %373 = vmatpush.msra.mxu0 0.0
        %374 = vmatpush.msra.mxu0 0.0
        %375 = vmatpush.msra.mxu0 %v355
        %376 = vmatmul.f32.gmra.mxu0 %v358
        %v377 = vpop.f32.mrf.mxu0
        %v378 = vadd.f32 %v203, %v377
        %379 = vdwg.mxu0
        %380 = vmatpush.msra.mxu0 0.0
        %381 = vmatpush.msra.mxu0 0.0
        %382 = vmatpush.msra.mxu0 0.0
        %383 = vmatpush.msra.mxu0 0.0
        %384 = vmatpush.msra.mxu0 0.0
        %385 = vmatpush.msra.mxu0 0.0
        %386 = vmatpush.msra.mxu0 0.0
        %387 = vmatpush.msra.mxu0 0.0
        %388 = vmatpush.msra.mxu0 0.0
        %389 = vmatpush.msra.mxu0 0.0
        %390 = vmatpush.msra.mxu0 0.0
        %391 = vmatpush.msra.mxu0 0.0
        %392 = vmatpush.msra.mxu0 0.0
        %393 = vmatpush.msra.mxu0 0.0
        %394 = vmatpush.msra.mxu0 0.0
        %395 = vmatpush.msra.mxu0 %v356
        %396 = vmatmul.f32.gmra.mxu0 %v358
        %v397 = vpop.f32.mrf.mxu0
        %v398 = vadd.f32 %v238, %v397
        %399 = vdwg.mxu0
        %v400 = vmax.f32 %v378, 0.0
        %v401 = vmax.f32 %v398, 0.0
        %v402 = vand.u32 2147483647, %v378
        %v403 = vand.u32 2147483647, %v398
        %v404 = vsub.f32 0.0, %v402
        %v405 = vsub.f32 0.0, %v403
        %v406 = vmul.f32 %v404, 1.442695
        %v407 = vpow.pop %v406
        %v408 = vmul.f32 %v405, 1.442695
        %v409 = vpow.pop %v408
        %v410 = vadd.f32 %v407, 1.0
        %v411 = vlog2.pop %v410
        %v412 = vmul.f32 %v411, 0.6931472
        %v413 = vmul.f32 -0.5, %v407
        %v414 = vadd.f32 %v413, 1.0
        %v415 = vmul.f32 %v414, %v407
        %v416 = vand.u32 2147483647, %v407
        %vm417 = vcmp.lt.f32.partialorder %v416, 0.0004427343
        %v418 = vsel %vm417, %v415, %v412
        %v419 = vadd.f32 %v409, 1.0
        %v420 = vlog2.pop %v419
        %v421 = vmul.f32 %v420, 0.6931472
        %v422 = vmul.f32 -0.5, %v409
        %v423 = vadd.f32 %v422, 1.0
        %v424 = vmul.f32 %v423, %v409
        %v425 = vand.u32 2147483647, %v409
        %vm426 = vcmp.lt.f32.partialorder %v425, 0.0004427343
        %v427 = vsel %vm426, %v424, %v421
        %v428 = vadd.f32 %v400, %v418
        %v429 = vadd.f32 %v401, %v427
        %v431 = vsel %vm283, %v251, 0
        %433 = vmatpush.msra.mxu0 0.0
        %434 = vmatpush.msra.mxu0 0.0
        %435 = vmatpush.msra.mxu0 0.0
        %436 = vmatpush.msra.mxu0 0.0
        %437 = vmatpush.msra.mxu0 0.0
        %438 = vmatpush.msra.mxu0 0.0
        %439 = vmatpush.msra.mxu0 0.0
        %440 = vmatpush.msra.mxu0 0.0
        %441 = vmatpush.msra.mxu0 0.0
        %442 = vmatpush.msra.mxu0 0.0
        %443 = vmatpush.msra.mxu0 0.0
        %444 = vmatpush.msra.mxu0 0.0
        %445 = vmatpush.msra.mxu0 0.0
        %446 = vmatpush.msra.mxu0 0.0
        %447 = vmatpush.msra.mxu0 0.0
        %448 = vmatpush.msra.mxu0 %v428
        %449 = vmatmul.f32.gmra.mxu0 %v431
        %v450 = vpop.f32.mrf.mxu0
        %v451 = vadd.f32 %v206, %v450
        %452 = vdwg.mxu0
        %453 = vmatpush.msra.mxu0 0.0
        %454 = vmatpush.msra.mxu0 0.0
        %455 = vmatpush.msra.mxu0 0.0
        %456 = vmatpush.msra.mxu0 0.0
        %457 = vmatpush.msra.mxu0 0.0
        %458 = vmatpush.msra.mxu0 0.0
        %459 = vmatpush.msra.mxu0 0.0
        %460 = vmatpush.msra.mxu0 0.0
        %461 = vmatpush.msra.mxu0 0.0
        %462 = vmatpush.msra.mxu0 0.0
        %463 = vmatpush.msra.mxu0 0.0
        %464 = vmatpush.msra.mxu0 0.0
        %465 = vmatpush.msra.mxu0 0.0
        %466 = vmatpush.msra.mxu0 0.0
        %467 = vmatpush.msra.mxu0 0.0
        %468 = vmatpush.msra.mxu0 %v429
        %469 = vmatmul.f32.gmra.mxu0 %v431
        %v470 = vpop.f32.mrf.mxu0
        %v471 = vadd.f32 %v241, %v470
        %472 = vdwg.mxu0
        %v473 = vmax.f32 %v451, 0.0
        %v474 = vmax.f32 %v471, 0.0
        %v475 = vand.u32 2147483647, %v451
        %v476 = vand.u32 2147483647, %v471
        %v477 = vsub.f32 0.0, %v475
        %v478 = vsub.f32 0.0, %v476
        %v479 = vmul.f32 %v477, 1.442695
        %v480 = vpow.pop %v479
        %v481 = vmul.f32 %v478, 1.442695
        %v482 = vpow.pop %v481
        %v483 = vadd.f32 %v480, 1.0
        %v484 = vlog2.pop %v483
        %v485 = vmul.f32 %v484, 0.6931472
        %v486 = vmul.f32 -0.5, %v480
        %v487 = vadd.f32 %v486, 1.0
        %v488 = vmul.f32 %v487, %v480
        %v489 = vand.u32 2147483647, %v480
        %vm490 = vcmp.lt.f32.partialorder %v489, 0.0004427343
        %v491 = vsel %vm490, %v488, %v485
        %v492 = vadd.f32 %v482, 1.0
        %v493 = vlog2.pop %v492
        %v494 = vmul.f32 %v493, 0.6931472
        %v495 = vmul.f32 -0.5, %v482
        %v496 = vadd.f32 %v495, 1.0
        %v497 = vmul.f32 %v496, %v482
        %v498 = vand.u32 2147483647, %v482
        %vm499 = vcmp.lt.f32.partialorder %v498, 0.0004427343
        %v500 = vsel %vm499, %v497, %v494
        %v501 = vadd.f32 %v473, %v491
        %v502 = vadd.f32 %v474, %v500
        %v504 = vsel %vm283, %v252, 0
        %506 = vmatpush.msra.mxu0 0.0
        %507 = vmatpush.msra.mxu0 0.0
        %508 = vmatpush.msra.mxu0 0.0
        %509 = vmatpush.msra.mxu0 0.0
        %510 = vmatpush.msra.mxu0 0.0
        %511 = vmatpush.msra.mxu0 0.0
        %512 = vmatpush.msra.mxu0 0.0
        %513 = vmatpush.msra.mxu0 0.0
        %514 = vmatpush.msra.mxu0 0.0
        %515 = vmatpush.msra.mxu0 0.0
        %516 = vmatpush.msra.mxu0 0.0
        %517 = vmatpush.msra.mxu0 0.0
        %518 = vmatpush.msra.mxu0 0.0
        %519 = vmatpush.msra.mxu0 0.0
        %520 = vmatpush.msra.mxu0 0.0
        %521 = vmatpush.msra.mxu0 %v501
        %522 = vmatmul.f32.gmra.mxu0 %v504
        %v523 = vpop.f32.mrf.mxu0
        %v524 = vadd.f32 %v209, %v523
        %525 = vdwg.mxu0
        %526 = vmatpush.msra.mxu0 0.0
        %527 = vmatpush.msra.mxu0 0.0
        %528 = vmatpush.msra.mxu0 0.0
        %529 = vmatpush.msra.mxu0 0.0
        %530 = vmatpush.msra.mxu0 0.0
        %531 = vmatpush.msra.mxu0 0.0
        %532 = vmatpush.msra.mxu0 0.0
        %533 = vmatpush.msra.mxu0 0.0
        %534 = vmatpush.msra.mxu0 0.0
        %535 = vmatpush.msra.mxu0 0.0
        %536 = vmatpush.msra.mxu0 0.0
        %537 = vmatpush.msra.mxu0 0.0
        %538 = vmatpush.msra.mxu0 0.0
        %539 = vmatpush.msra.mxu0 0.0
        %540 = vmatpush.msra.mxu0 0.0
        %541 = vmatpush.msra.mxu0 %v502
        %542 = vmatmul.f32.gmra.mxu0 %v504
        %v543 = vpop.f32.mrf.mxu0
        %v544 = vadd.f32 %v244, %v543
        %545 = vdwg.mxu0
        %v546 = vmax.f32 %v524, 0.0
        %v547 = vmax.f32 %v544, 0.0
        %v548 = vand.u32 2147483647, %v524
        %v549 = vand.u32 2147483647, %v544
        %v550 = vsub.f32 0.0, %v548
        %v551 = vsub.f32 0.0, %v549
        %v552 = vmul.f32 %v550, 1.442695
        %v553 = vpow.pop %v552
        %v554 = vmul.f32 %v551, 1.442695
        %v555 = vpow.pop %v554
        %v556 = vadd.f32 %v553, 1.0
        %v557 = vlog2.pop %v556
        %v558 = vmul.f32 %v557, 0.6931472
        %v559 = vmul.f32 -0.5, %v553
        %v560 = vadd.f32 %v559, 1.0
        %v561 = vmul.f32 %v560, %v553
        %v562 = vand.u32 2147483647, %v553
        %vm563 = vcmp.lt.f32.partialorder %v562, 0.0004427343
        %v564 = vsel %vm563, %v561, %v558
        %v565 = vadd.f32 %v555, 1.0
        %v566 = vlog2.pop %v565
        %v567 = vmul.f32 %v566, 0.6931472
        %v568 = vmul.f32 -0.5, %v555
        %v569 = vadd.f32 %v568, 1.0
        %v570 = vmul.f32 %v569, %v555
        %v571 = vand.u32 2147483647, %v555
        %vm572 = vcmp.lt.f32.partialorder %v571, 0.0004427343
        %v573 = vsel %vm572, %v570, %v567
        %v574 = vadd.f32 %v546, %v564
        %v575 = vadd.f32 %v547, %v573
        %v576 = vld [vmem:[%s1 + $0x98] sm:$0xff]
        %v577 = vld [vmem:[%s1 + $0xa0] sm:$0xff]
        %579 = vset.pattern.permute.xlu0 0
        %580 = vperm.xlu0 %579, %v576
        %v581 = vpop.permute.xlu0 %580
        %v583 = vmul.f32 %v581, %v574
        %v584 = vmul.f32 %v581, %v575
        %v585 = vrot.slane %v583, 4
        %v586 = vadd.f32 %v583, %v585
        %v587 = vrot.slane %v586, 2
        %v588 = vadd.f32 %v586, %v587
        %v589 = vrot.slane %v588, 1
        %v590 = vadd.f32 %v588, %v589
        %v591 = vrot.slane %v584, 4
        %v592 = vadd.f32 %v584, %v591
        %v593 = vrot.slane %v592, 2
        %v594 = vadd.f32 %v592, %v593
        %v595 = vrot.slane %v594, 1
        %v596 = vadd.f32 %v594, %v595
        %v597 = vadd.f32 %v590, %v212
        %v598 = vadd.f32 %v596, %v247
        %v599 = vld [vmem:[%s1 + $0x50] sm:$0xff]
        %v600 = vld [vmem:[%s1 + $0x58] sm:$0xff]
        %v601 = vld [vmem:[%s1 + $0x60] sm:$0xff]
        %v602 = vld [vmem:[%s1 + $0x68] sm:$0xff]
        %v603 = vld [vmem:[%s1 + $0x70] sm:$0xff]
        %v604 = vld [vmem:[%s1 + $0x78] sm:$0xff]
        %v605 = vld [vmem:[%s1 + $0x80] sm:$0xff]
        %v606 = vld [vmem:[%s1 + $0x88] sm:$0xff]
        %v607 = vld [vmem:[%s1 + $0x90] sm:$0xff]
        %v608 = vand.u32 2147483647, %v597
        %v609 = vand.u32 2147483647, %v598
        %v610 = vsub.f32 0.0, %v608
        %v611 = vsub.f32 0.0, %v609
        %v612 = vmul.f32 %v610, 1.442695
        %v613 = vpow.pop %v612
        %v614 = vmul.f32 %v611, 1.442695
        %v615 = vpow.pop %v614
        %vm616 = vcmp.ge.f32.partialorder %v597, 0.0
        %vm617 = vcmp.ge.f32.partialorder %v598, 0.0
        %v618 = vsel %vm616, 1.0, %v613
        %v619 = vsel %vm617, 1.0, %v615
        %v620 = vadd.f32 %v613, 1.0
        %v621 = vadd.f32 %v615, 1.0
        %v622 = vrcp.pop %v620
        %v623 = vmul.f32 %v620, %v622
        %v624 = vsub.f32 1.0, %v623
        %v625 = vmul.f32 %v622, %v624
        %v626 = vadd.f32 %v622, %v625
        %vm627 = vweird.f32 %v620
        %vm628 = vweird.f32 %v622
        %vm629 = vmor %vm627, %vm628
        %v630 = vsel %vm629, %v622, %v626
        %v631 = vand.u32 2147483647, %v620
        %vm632 = vcmp.eq.f32.partialorder %v631, 8.507059e+37
        %v633 = vand.u32 %v620, 2147483648
        %v634 = vor.u32 1.1754944e-38, %v633
        %v635 = vsel %vm632, %v634, %v630
        %v636 = vmul.f32 %v618, %v635
        %v637 = vrcp.pop %v621
        %v638 = vmul.f32 %v621, %v637
        %v639 = vsub.f32 1.0, %v638
        %v640 = vmul.f32 %v637, %v639
        %v641 = vadd.f32 %v637, %v640
        %vm642 = vweird.f32 %v621
        %vm643 = vweird.f32 %v637
        %vm644 = vmor %vm642, %vm643
        %v645 = vsel %vm644, %v637, %v641
        %v646 = vand.u32 2147483647, %v621
        %vm647 = vcmp.eq.f32.partialorder %v646, 8.507059e+37
        %v648 = vand.u32 %v621, 2147483648
        %v649 = vor.u32 1.1754944e-38, %v648
        %v650 = vsel %vm647, %v649, %v645
        %v651 = vmul.f32 %v619, %v650
        %v652 = vsub.f32 0.0, %v636
        %v653 = vsub.f32 0.0, %v651
        %655 = vset.pattern.permute.xlu0 0
        %656 = vperm.xlu0 %655, %v577
        %v657 = vpop.permute.xlu0 %656
        %v659 = vperm.slane %v652, 0
        %v660 = vperm.slane %v653, 0
        %v661 = vmul.f32 %v657, %v659
        %v662 = vmul.f32 %v657, %v660
        %v663 = vmul.f32 %v581, %v659
        %v664 = vmul.f32 %v581, %v660
        %v665 = vsub.f32 0.0, %v574
        %v666 = vsub.f32 0.0, %v575
        %v667 = vmul.f32 %v665, 1.442695
        %v668 = vpow.pop %v667
        %v669 = vmul.f32 %v666, 1.442695
        %v670 = vpow.pop %v669
        %v671 = vsub.f32 1.0, %v668
        %v672 = vsub.f32 1.0, %v670
        %v673 = vmul.f32 %v663, %v671
        %v674 = vmul.f32 %v664, %v672
        %v676 = vsel %vm283, %v606, 0
        %v679 = vsel %vm283, %v607, 0
        %681 = vmatpush.msra.mxu0 0.0
        %682 = vmatpush.msra.mxu0 0.0
        %683 = vmatpush.msra.mxu0 0.0
        %684 = vmatpush.msra.mxu0 0.0
        %685 = vmatpush.msra.mxu0 0.0
        %686 = vmatpush.msra.mxu0 0.0
        %687 = vmatpush.msra.mxu0 0.0
        %688 = vmatpush.msra.mxu0 0.0
        %689 = vmatpush.msra.mxu0 0.0
        %690 = vmatpush.msra.mxu0 0.0
        %691 = vmatpush.msra.mxu0 0.0
        %692 = vmatpush.msra.mxu0 0.0
        %693 = vmatpush.msra.mxu0 0.0
        %694 = vmatpush.msra.mxu0 0.0
        %695 = vmatpush.msra.mxu0 0.0
        %696 = vmatpush.msra.mxu0 %v673
        %697 = vmatmul.f32.gmra.mxu0 %v676
        %v698 = vpop.f32.mrf.mxu0
        %v699 = vadd.f32 0.0, %v698
        %700 = vmatmul.f32.gmra.mxu0 %v679
        %v701 = vpop.f32.mrf.mxu0
        %v702 = vadd.f32 0.0, %v701
        %703 = vdwg.mxu0
        %704 = vmatpush.msra.mxu0 0.0
        %705 = vmatpush.msra.mxu0 0.0
        %706 = vmatpush.msra.mxu0 0.0
        %707 = vmatpush.msra.mxu0 0.0
        %708 = vmatpush.msra.mxu0 0.0
        %709 = vmatpush.msra.mxu0 0.0
        %710 = vmatpush.msra.mxu0 0.0
        %711 = vmatpush.msra.mxu0 0.0
        %712 = vmatpush.msra.mxu0 0.0
        %713 = vmatpush.msra.mxu0 0.0
        %714 = vmatpush.msra.mxu0 0.0
        %715 = vmatpush.msra.mxu0 0.0
        %716 = vmatpush.msra.mxu0 0.0
        %717 = vmatpush.msra.mxu0 0.0
        %718 = vmatpush.msra.mxu0 0.0
        %719 = vmatpush.msra.mxu0 %v674
        %720 = vmatmul.f32.gmra.mxu0 %v676
        %v721 = vpop.f32.mrf.mxu0
        %v722 = vadd.f32 0.0, %v721
        %723 = vmatmul.f32.gmra.mxu0 %v679
        %v724 = vpop.f32.mrf.mxu0
        %v725 = vadd.f32 0.0, %v724
        %726 = vdwg.mxu0
        %v727 = vadd.f32 %v661, %v702
        %v728 = vadd.f32 %v662, %v725
        %v729 = vsub.f32 0.0, %v501
        %v730 = vsub.f32 0.0, %v502
        %v731 = vmul.f32 %v729, 1.442695
        %v732 = vpow.pop %v731
        %v733 = vmul.f32 %v730, 1.442695
        %v734 = vpow.pop %v733
        %v735 = vsub.f32 1.0, %v732
        %v736 = vsub.f32 1.0, %v734
        %v737 = vmul.f32 %v699, %v735
        %v738 = vmul.f32 %v722, %v736
        %v740 = vsel %vm283, %v604, 0
        %v743 = vsel %vm283, %v605, 0
        %745 = vmatpush.msra.mxu0 0.0
        %746 = vmatpush.msra.mxu0 0.0
        %747 = vmatpush.msra.mxu0 0.0
        %748 = vmatpush.msra.mxu0 0.0
        %749 = vmatpush.msra.mxu0 0.0
        %750 = vmatpush.msra.mxu0 0.0
        %751 = vmatpush.msra.mxu0 0.0
        %752 = vmatpush.msra.mxu0 0.0
        %753 = vmatpush.msra.mxu0 0.0
        %754 = vmatpush.msra.mxu0 0.0
        %755 = vmatpush.msra.mxu0 0.0
        %756 = vmatpush.msra.mxu0 0.0
        %757 = vmatpush.msra.mxu0 0.0
        %758 = vmatpush.msra.mxu0 0.0
        %759 = vmatpush.msra.mxu0 0.0
        %760 = vmatpush.msra.mxu0 %v737
        %761 = vmatmul.f32.gmra.mxu0 %v740
        %v762 = vpop.f32.mrf.mxu0
        %v763 = vadd.f32 0.0, %v762
        %764 = vmatmul.f32.gmra.mxu0 %v743
        %v765 = vpop.f32.mrf.mxu0
        %v766 = vadd.f32 0.0, %v765
        %767 = vdwg.mxu0
        %768 = vmatpush.msra.mxu0 0.0
        %769 = vmatpush.msra.mxu0 0.0
        %770 = vmatpush.msra.mxu0 0.0
        %771 = vmatpush.msra.mxu0 0.0
        %772 = vmatpush.msra.mxu0 0.0
        %773 = vmatpush.msra.mxu0 0.0
        %774 = vmatpush.msra.mxu0 0.0
        %775 = vmatpush.msra.mxu0 0.0
        %776 = vmatpush.msra.mxu0 0.0
        %777 = vmatpush.msra.mxu0 0.0
        %778 = vmatpush.msra.mxu0 0.0
        %779 = vmatpush.msra.mxu0 0.0
        %780 = vmatpush.msra.mxu0 0.0
        %781 = vmatpush.msra.mxu0 0.0
        %782 = vmatpush.msra.mxu0 0.0
        %783 = vmatpush.msra.mxu0 %v738
        %784 = vmatmul.f32.gmra.mxu0 %v740
        %v785 = vpop.f32.mrf.mxu0
        %v786 = vadd.f32 0.0, %v785
        %787 = vmatmul.f32.gmra.mxu0 %v743
        %v788 = vpop.f32.mrf.mxu0
        %v789 = vadd.f32 0.0, %v788
        %790 = vdwg.mxu0
        %v791 = vadd.f32 %v727, %v766
        %v792 = vadd.f32 %v728, %v789
        %v793 = vsub.f32 0.0, %v428
        %v794 = vsub.f32 0.0, %v429
        %v795 = vmul.f32 %v793, 1.442695
        %v796 = vpow.pop %v795
        %v797 = vmul.f32 %v794, 1.442695
        %v798 = vpow.pop %v797
        %v799 = vsub.f32 1.0, %v796
        %v800 = vsub.f32 1.0, %v798
        %v801 = vmul.f32 %v763, %v799
        %v802 = vmul.f32 %v786, %v800
        %v804 = vsel %vm283, %v602, 0
        %v807 = vsel %vm283, %v603, 0
        %809 = vmatpush.msra.mxu0 0.0
        %810 = vmatpush.msra.mxu0 0.0
        %811 = vmatpush.msra.mxu0 0.0
        %812 = vmatpush.msra.mxu0 0.0
        %813 = vmatpush.msra.mxu0 0.0
        %814 = vmatpush.msra.mxu0 0.0
        %815 = vmatpush.msra.mxu0 0.0
        %816 = vmatpush.msra.mxu0 0.0
        %817 = vmatpush.msra.mxu0 0.0
        %818 = vmatpush.msra.mxu0 0.0
        %819 = vmatpush.msra.mxu0 0.0
        %820 = vmatpush.msra.mxu0 0.0
        %821 = vmatpush.msra.mxu0 0.0
        %822 = vmatpush.msra.mxu0 0.0
        %823 = vmatpush.msra.mxu0 0.0
        %824 = vmatpush.msra.mxu0 %v801
        %825 = vmatmul.f32.gmra.mxu0 %v804
        %v826 = vpop.f32.mrf.mxu0
        %v827 = vadd.f32 0.0, %v826
        %828 = vmatmul.f32.gmra.mxu0 %v807
        %v829 = vpop.f32.mrf.mxu0
        %v830 = vadd.f32 0.0, %v829
        %831 = vdwg.mxu0
        %832 = vmatpush.msra.mxu0 0.0
        %833 = vmatpush.msra.mxu0 0.0
        %834 = vmatpush.msra.mxu0 0.0
        %835 = vmatpush.msra.mxu0 0.0
        %836 = vmatpush.msra.mxu0 0.0
        %837 = vmatpush.msra.mxu0 0.0
        %838 = vmatpush.msra.mxu0 0.0
        %839 = vmatpush.msra.mxu0 0.0
        %840 = vmatpush.msra.mxu0 0.0
        %841 = vmatpush.msra.mxu0 0.0
        %842 = vmatpush.msra.mxu0 0.0
        %843 = vmatpush.msra.mxu0 0.0
        %844 = vmatpush.msra.mxu0 0.0
        %845 = vmatpush.msra.mxu0 0.0
        %846 = vmatpush.msra.mxu0 0.0
        %847 = vmatpush.msra.mxu0 %v802
        %848 = vmatmul.f32.gmra.mxu0 %v804
        %v849 = vpop.f32.mrf.mxu0
        %v850 = vadd.f32 0.0, %v849
        %851 = vmatmul.f32.gmra.mxu0 %v807
        %v852 = vpop.f32.mrf.mxu0
        %v853 = vadd.f32 0.0, %v852
        %854 = vdwg.mxu0
        %v855 = vadd.f32 %v791, %v830
        %v856 = vadd.f32 %v792, %v853
        %v857 = vsub.f32 0.0, %v355
        %v858 = vsub.f32 0.0, %v356
        %v859 = vmul.f32 %v857, 1.442695
        %v860 = vpow.pop %v859
        %v861 = vmul.f32 %v858, 1.442695
        %v862 = vpow.pop %v861
        %v863 = vsub.f32 1.0, %v860
        %v864 = vsub.f32 1.0, %v862
        %v865 = vmul.f32 %v827, %v863
        %v866 = vmul.f32 %v850, %v864
        %v868 = vsel %vm283, %v600, 0
        %v871 = vsel %vm283, %v601, 0
        %873 = vmatpush.msra.mxu0 0.0
        %874 = vmatpush.msra.mxu0 0.0
        %875 = vmatpush.msra.mxu0 0.0
        %876 = vmatpush.msra.mxu0 0.0
        %877 = vmatpush.msra.mxu0 0.0
        %878 = vmatpush.msra.mxu0 0.0
        %879 = vmatpush.msra.mxu0 0.0
        %880 = vmatpush.msra.mxu0 0.0
        %881 = vmatpush.msra.mxu0 0.0
        %882 = vmatpush.msra.mxu0 0.0
        %883 = vmatpush.msra.mxu0 0.0
        %884 = vmatpush.msra.mxu0 0.0
        %885 = vmatpush.msra.mxu0 0.0
        %886 = vmatpush.msra.mxu0 0.0
        %887 = vmatpush.msra.mxu0 0.0
        %888 = vmatpush.msra.mxu0 %v865
        %889 = vmatmul.f32.gmra.mxu0 %v868
        %v890 = vpop.f32.mrf.mxu0
        %v891 = vadd.f32 0.0, %v890
        %892 = vmatmul.f32.gmra.mxu0 %v871
        %v893 = vpop.f32.mrf.mxu0
        %v894 = vadd.f32 0.0, %v893
        %895 = vdwg.mxu0
        %896 = vmatpush.msra.mxu0 0.0
        %897 = vmatpush.msra.mxu0 0.0
        %898 = vmatpush.msra.mxu0 0.0
        %899 = vmatpush.msra.mxu0 0.0
        %900 = vmatpush.msra.mxu0 0.0
        %901 = vmatpush.msra.mxu0 0.0
        %902 = vmatpush.msra.mxu0 0.0
        %903 = vmatpush.msra.mxu0 0.0
        %904 = vmatpush.msra.mxu0 0.0
        %905 = vmatpush.msra.mxu0 0.0
        %906 = vmatpush.msra.mxu0 0.0
        %907 = vmatpush.msra.mxu0 0.0
        %908 = vmatpush.msra.mxu0 0.0
        %909 = vmatpush.msra.mxu0 0.0
        %910 = vmatpush.msra.mxu0 0.0
        %911 = vmatpush.msra.mxu0 %v866
        %912 = vmatmul.f32.gmra.mxu0 %v868
        %v913 = vpop.f32.mrf.mxu0
        %v914 = vadd.f32 0.0, %v913
        %915 = vmatmul.f32.gmra.mxu0 %v871
        %v916 = vpop.f32.mrf.mxu0
        %v917 = vadd.f32 0.0, %v916
        %918 = vdwg.mxu0
        %v919 = vadd.f32 %v855, %v894
        %v920 = vadd.f32 %v856, %v917
        %v921 = vsub.f32 0.0, %v281
        %v922 = vsub.f32 0.0, %v282
        %v923 = vmul.f32 %v921, 1.442695
        %v924 = vpow.pop %v923
        %v925 = vmul.f32 %v922, 1.442695
        %v926 = vpow.pop %v925
        %v927 = vsub.f32 1.0, %v924
        %v928 = vsub.f32 1.0, %v926
        %v929 = vmul.f32 %v891, %v927
        %v930 = vmul.f32 %v914, %v928
        %v932 = vsel %vm283, %v599, 0
        %934 = vmatpush.msra.mxu0 0.0
        %935 = vmatpush.msra.mxu0 0.0
        %936 = vmatpush.msra.mxu0 0.0
        %937 = vmatpush.msra.mxu0 0.0
        %938 = vmatpush.msra.mxu0 0.0
        %939 = vmatpush.msra.mxu0 0.0
        %940 = vmatpush.msra.mxu0 0.0
        %941 = vmatpush.msra.mxu0 0.0
        %942 = vmatpush.msra.mxu0 0.0
        %943 = vmatpush.msra.mxu0 0.0
        %944 = vmatpush.msra.mxu0 0.0
        %945 = vmatpush.msra.mxu0 0.0
        %946 = vmatpush.msra.mxu0 0.0
        %947 = vmatpush.msra.mxu0 0.0
        %948 = vmatpush.msra.mxu0 0.0
        %949 = vmatpush.msra.mxu0 %v929
        %950 = vmatmul.f32.gmra.mxu0 %v932
        %v951 = vpop.f32.mrf.mxu0
        %v952 = vadd.f32 0.0, %v951
        %953 = vdwg.mxu0
        %954 = vmatpush.msra.mxu0 0.0
        %955 = vmatpush.msra.mxu0 0.0
        %956 = vmatpush.msra.mxu0 0.0
        %957 = vmatpush.msra.mxu0 0.0
        %958 = vmatpush.msra.mxu0 0.0
        %959 = vmatpush.msra.mxu0 0.0
        %960 = vmatpush.msra.mxu0 0.0
        %961 = vmatpush.msra.mxu0 0.0
        %962 = vmatpush.msra.mxu0 0.0
        %963 = vmatpush.msra.mxu0 0.0
        %964 = vmatpush.msra.mxu0 0.0
        %965 = vmatpush.msra.mxu0 0.0
        %966 = vmatpush.msra.mxu0 0.0
        %967 = vmatpush.msra.mxu0 0.0
        %968 = vmatpush.msra.mxu0 0.0
        %969 = vmatpush.msra.mxu0 %v930
        %970 = vmatmul.f32.gmra.mxu0 %v932
        %v971 = vpop.f32.mrf.mxu0
        %v972 = vadd.f32 0.0, %v971
        %973 = vdwg.mxu0
        %v974 = vadd.f32 %v919, %v952
        %v975 = vadd.f32 %v920, %v972
        %v976 = vld [vmem:[%s1 + $0xb8] sm:$0xff]
        %v977 = vld [vmem:[%s1 + $0xc0] sm:$0xff]
        %v978 = vld [vmem:[%s1 + $0xc8] sm:$0xff]
        %v980 = vsel %vm153, %v976, 0
        %v983 = vsel %vm153, %v977, 0
        %v986 = vsel %vm153, %v978, 0
        %988 = vmatpush.msra.mxu0 0.0
        %989 = vmatpush.msra.mxu0 0.0
        %990 = vmatpush.msra.mxu0 0.0
        %991 = vmatpush.msra.mxu0 0.0
        %992 = vmatpush.msra.mxu0 0.0
        %993 = vmatpush.msra.mxu0 0.0
        %994 = vmatpush.msra.mxu0 0.0
        %995 = vmatpush.msra.mxu0 0.0
        %996 = vmatpush.msra.mxu0 0.0
        %997 = vmatpush.msra.mxu0 0.0
        %998 = vmatpush.msra.mxu0 0.0
        %999 = vmatpush.msra.mxu0 0.0
        %1000 = vmatpush.msra.mxu0 0.0
        %1001 = vmatpush.msra.mxu0 0.0
        %1002 = vmatpush.msra.mxu0 0.0
        %1003 = vmatpush.msra.mxu0 %v174
        %1004 = vmatmul.f32.gmra.mxu0 %v980
        %v1005 = vpop.f32.mrf.mxu0
        %v1006 = vadd.f32 0.0, %v1005
        %1007 = vmatmul.f32.gmra.mxu0 %v983
        %v1008 = vpop.f32.mrf.mxu0
        %v1009 = vadd.f32 0.0, %v1008
        %1010 = vmatmul.f32.gmra.mxu0 %v986
        %v1011 = vpop.f32.mrf.mxu0
        %v1012 = vadd.f32 0.0, %v1011
        %1013 = vdwg.mxu0
        %1014 = vmatpush.msra.mxu0 0.0
        %1015 = vmatpush.msra.mxu0 0.0
        %1016 = vmatpush.msra.mxu0 0.0
        %1017 = vmatpush.msra.mxu0 0.0
        %1018 = vmatpush.msra.mxu0 0.0
        %1019 = vmatpush.msra.mxu0 0.0
        %1020 = vmatpush.msra.mxu0 0.0
        %1021 = vmatpush.msra.mxu0 0.0
        %1022 = vmatpush.msra.mxu0 0.0
        %1023 = vmatpush.msra.mxu0 0.0
        %1024 = vmatpush.msra.mxu0 0.0
        %1025 = vmatpush.msra.mxu0 0.0
        %1026 = vmatpush.msra.mxu0 0.0
        %1027 = vmatpush.msra.mxu0 0.0
        %1028 = vmatpush.msra.mxu0 0.0
        %1029 = vmatpush.msra.mxu0 %v177
        %1030 = vmatmul.f32.gmra.mxu0 %v980
        %v1031 = vpop.f32.mrf.mxu0
        %v1032 = vadd.f32 0.0, %v1031
        %1033 = vmatmul.f32.gmra.mxu0 %v983
        %v1034 = vpop.f32.mrf.mxu0
        %v1035 = vadd.f32 0.0, %v1034
        %1036 = vmatmul.f32.gmra.mxu0 %v986
        %v1037 = vpop.f32.mrf.mxu0
        %v1038 = vadd.f32 0.0, %v1037
        %1039 = vdwg.mxu0
        %v1040 = vmax.f32 %v1006, 0.0
        %v1041 = vmax.f32 %v1032, 0.0
        %v1042 = vand.u32 2147483647, %v1006
        %v1043 = vand.u32 2147483647, %v1032
        %v1044 = vsub.f32 0.0, %v1042
        %v1045 = vsub.f32 0.0, %v1043
        %v1046 = vmul.f32 %v1044, 1.442695
        %v1047 = vpow.pop %v1046
        %v1048 = vmul.f32 %v1045, 1.442695
        %v1049 = vpow.pop %v1048
        %v1050 = vadd.f32 %v1047, 1.0
        %v1051 = vlog2.pop %v1050
        %v1052 = vmul.f32 %v1051, 0.6931472
        %v1053 = vmul.f32 -0.5, %v1047
        %v1054 = vadd.f32 %v1053, 1.0
        %v1055 = vmul.f32 %v1054, %v1047
        %v1056 = vand.u32 2147483647, %v1047
        %vm1057 = vcmp.lt.f32.partialorder %v1056, 0.0004427343
        %v1058 = vsel %vm1057, %v1055, %v1052
        %v1059 = vadd.f32 %v1049, 1.0
        %v1060 = vlog2.pop %v1059
        %v1061 = vmul.f32 %v1060, 0.6931472
        %v1062 = vmul.f32 -0.5, %v1049
        %v1063 = vadd.f32 %v1062, 1.0
        %v1064 = vmul.f32 %v1063, %v1049
        %v1065 = vand.u32 2147483647, %v1049
        %vm1066 = vcmp.lt.f32.partialorder %v1065, 0.0004427343
        %v1067 = vsel %vm1066, %v1064, %v1061
        %v1068 = vadd.f32 %v1040, %v1058
        %v1069 = vadd.f32 %v1041, %v1067
        %v1070 = vld [vmem:[%s1 + $0xd0] sm:$0xff]
        %v1071 = vld [vmem:[%s1 + $0xd8] sm:$0xff]
        %v1072 = vld [vmem:[%s1 + $0xe0] sm:$0xff]
        %v1073 = vld [vmem:[%s1 + $0xe8] sm:$0xff]
        %v1074 = vld [vmem:[%s1 + $0xf0] sm:$0xff]
        %v1075 = vld [vmem:[%s1 + $0xf8] sm:$0xff]
        %v1076 = vld [vmem:[%s1 + $0x100] sm:$0xff]
        %v1077 = vld [vmem:[%s1 + $0x108] sm:$0xff]
        %1079 = vset.pattern.permute.xlu0 0
        %1080 = vperm.xlu0 %1079, %v1074
        %v1081 = vpop.permute.xlu0 %1080
        %1084 = vset.pattern.permute.xlu0 0
        %1085 = vperm.xlu0 %1084, %v1075
        %v1086 = vpop.permute.xlu0 %1085
        %1089 = vset.pattern.permute.xlu0 0
        %1090 = vperm.xlu0 %1089, %v1076
        %v1091 = vpop.permute.xlu0 %1090
        %1094 = vset.pattern.permute.xlu0 0
        %1095 = vperm.xlu0 %1094, %v1077
        %v1096 = vpop.permute.xlu0 %1095
        %v1099 = vsel %vm283, %v1070, 0
        %v1102 = vsel %vm283, %v1071, 0
        %v1105 = vsel %vm283, %v1072, 0
        %v1108 = vsel %vm283, %v1073, 0
        %1110 = vmatpush.msra.mxu0 0.0
        %1111 = vmatpush.msra.mxu0 0.0
        %1112 = vmatpush.msra.mxu0 0.0
        %1113 = vmatpush.msra.mxu0 0.0
        %1114 = vmatpush.msra.mxu0 0.0
        %1115 = vmatpush.msra.mxu0 0.0
        %1116 = vmatpush.msra.mxu0 0.0
        %1117 = vmatpush.msra.mxu0 0.0
        %1118 = vmatpush.msra.mxu0 0.0
        %1119 = vmatpush.msra.mxu0 0.0
        %1120 = vmatpush.msra.mxu0 0.0
        %1121 = vmatpush.msra.mxu0 0.0
        %1122 = vmatpush.msra.mxu0 0.0
        %1123 = vmatpush.msra.mxu0 0.0
        %1124 = vmatpush.msra.mxu0 0.0
        %1125 = vmatpush.msra.mxu0 %v1068
        %1126 = vmatmul.f32.gmra.mxu0 %v1099
        %v1127 = vpop.f32.mrf.mxu0
        %v1128 = vadd.f32 %v1081, %v1127
        %1129 = vmatmul.f32.gmra.mxu0 %v1102
        %v1130 = vpop.f32.mrf.mxu0
        %v1131 = vadd.f32 %v1086, %v1130
        %1132 = vmatmul.f32.gmra.mxu0 %v1105
        %v1133 = vpop.f32.mrf.mxu0
        %v1134 = vadd.f32 %v1091, %v1133
        %1135 = vmatmul.f32.gmra.mxu0 %v1108
        %v1136 = vpop.f32.mrf.mxu0
        %v1137 = vadd.f32 %v1096, %v1136
        %1138 = vdwg.mxu0
        %1139 = vmatpush.msra.mxu0 0.0
        %1140 = vmatpush.msra.mxu0 0.0
        %1141 = vmatpush.msra.mxu0 0.0
        %1142 = vmatpush.msra.mxu0 0.0
        %1143 = vmatpush.msra.mxu0 0.0
        %1144 = vmatpush.msra.mxu0 0.0
        %1145 = vmatpush.msra.mxu0 0.0
        %1146 = vmatpush.msra.mxu0 0.0
        %1147 = vmatpush.msra.mxu0 0.0
        %1148 = vmatpush.msra.mxu0 0.0
        %1149 = vmatpush.msra.mxu0 0.0
        %1150 = vmatpush.msra.mxu0 0.0
        %1151 = vmatpush.msra.mxu0 0.0
        %1152 = vmatpush.msra.mxu0 0.0
        %1153 = vmatpush.msra.mxu0 0.0
        %1154 = vmatpush.msra.mxu0 %v1069
        %1155 = vmatmul.f32.gmra.mxu0 %v1099
        %v1156 = vpop.f32.mrf.mxu0
        %v1157 = vadd.f32 %v1081, %v1156
        %1158 = vmatmul.f32.gmra.mxu0 %v1102
        %v1159 = vpop.f32.mrf.mxu0
        %v1160 = vadd.f32 %v1086, %v1159
        %1161 = vmatmul.f32.gmra.mxu0 %v1105
        %v1162 = vpop.f32.mrf.mxu0
        %v1163 = vadd.f32 %v1091, %v1162
        %1164 = vmatmul.f32.gmra.mxu0 %v1108
        %v1165 = vpop.f32.mrf.mxu0
        %v1166 = vadd.f32 %v1096, %v1165
        %1167 = vdwg.mxu0
        %v1168 = vmax.f32 %v1128, 0.0
        %v1169 = vmax.f32 %v1157, 0.0
        %v1170 = vand.u32 2147483647, %v1128
        %v1171 = vand.u32 2147483647, %v1157
        %v1172 = vsub.f32 0.0, %v1170
        %v1173 = vsub.f32 0.0, %v1171
        %v1174 = vmul.f32 %v1172, 1.442695
        %v1175 = vpow.pop %v1174
        %v1176 = vmul.f32 %v1173, 1.442695
        %v1177 = vpow.pop %v1176
        %v1178 = vadd.f32 %v1175, 1.0
        %v1179 = vlog2.pop %v1178
        %v1180 = vmul.f32 %v1179, 0.6931472
        %v1181 = vmul.f32 -0.5, %v1175
        %v1182 = vadd.f32 %v1181, 1.0
        %v1183 = vmul.f32 %v1182, %v1175
        %v1184 = vand.u32 2147483647, %v1175
        %vm1185 = vcmp.lt.f32.partialorder %v1184, 0.0004427343
        %v1186 = vsel %vm1185, %v1183, %v1180
        %v1187 = vadd.f32 %v1177, 1.0
        %v1188 = vlog2.pop %v1187
        %v1189 = vmul.f32 %v1188, 0.6931472
        %v1190 = vmul.f32 -0.5, %v1177
        %v1191 = vadd.f32 %v1190, 1.0
        %v1192 = vmul.f32 %v1191, %v1177
        %v1193 = vand.u32 2147483647, %v1177
        %vm1194 = vcmp.lt.f32.partialorder %v1193, 0.0004427343
        %v1195 = vsel %vm1194, %v1192, %v1189
        %v1196 = vadd.f32 %v1168, %v1186
        %v1197 = vadd.f32 %v1169, %v1195
        %v1198 = vmax.f32 %v1134, 0.0
        %v1199 = vmax.f32 %v1163, 0.0
        %v1200 = vand.u32 2147483647, %v1134
        %v1201 = vand.u32 2147483647, %v1163
        %v1202 = vsub.f32 0.0, %v1200
        %v1203 = vsub.f32 0.0, %v1201
        %v1204 = vmul.f32 %v1202, 1.442695
        %v1205 = vpow.pop %v1204
        %v1206 = vmul.f32 %v1203, 1.442695
        %v1207 = vpow.pop %v1206
        %v1208 = vadd.f32 %v1205, 1.0
        %v1209 = vlog2.pop %v1208
        %v1210 = vmul.f32 %v1209, 0.6931472
        %v1211 = vmul.f32 -0.5, %v1205
        %v1212 = vadd.f32 %v1211, 1.0
        %v1213 = vmul.f32 %v1212, %v1205
        %v1214 = vand.u32 2147483647, %v1205
        %vm1215 = vcmp.lt.f32.partialorder %v1214, 0.0004427343
        %v1216 = vsel %vm1215, %v1213, %v1210
        %v1217 = vadd.f32 %v1207, 1.0
        %v1218 = vlog2.pop %v1217
        %v1219 = vmul.f32 %v1218, 0.6931472
        %v1220 = vmul.f32 -0.5, %v1207
        %v1221 = vadd.f32 %v1220, 1.0
        %v1222 = vmul.f32 %v1221, %v1207
        %v1223 = vand.u32 2147483647, %v1207
        %vm1224 = vcmp.lt.f32.partialorder %v1223, 0.0004427343
        %v1225 = vsel %vm1224, %v1222, %v1219
        %v1226 = vadd.f32 %v1198, %v1216
        %v1227 = vadd.f32 %v1199, %v1225
        %v1228 = vld [vmem:[%s1 + $0x110] sm:$0xff]
        %v1229 = vld [vmem:[%s1 + $0x118] sm:$0xff]
        %v1230 = vld [vmem:[%s1 + $0x120] sm:$0xff]
        %v1231 = vld [vmem:[%s1 + $0x128] sm:$0xff]
        %v1232 = vld [vmem:[%s1 + $0x130] sm:$0xff]
        %v1233 = vld [vmem:[%s1 + $0x138] sm:$0xff]
        %1235 = vset.pattern.permute.xlu0 0
        %1236 = vperm.xlu0 %1235, %v1231
        %v1237 = vpop.permute.xlu0 %1236
        %1240 = vset.pattern.permute.xlu0 0
        %1241 = vperm.xlu0 %1240, %v1232
        %v1242 = vpop.permute.xlu0 %1241
        %1245 = vset.pattern.permute.xlu0 0
        %1246 = vperm.xlu0 %1245, %v1233
        %v1247 = vpop.permute.xlu0 %1246
        %v1250 = vsel %vm283, %v1228, 0
        %v1253 = vsel %vm283, %v1229, 0
        %v1256 = vsel %vm283, %v1230, 0
        %1258 = vmatpush.msra.mxu0 0.0
        %1259 = vmatpush.msra.mxu0 0.0
        %1260 = vmatpush.msra.mxu0 0.0
        %1261 = vmatpush.msra.mxu0 0.0
        %1262 = vmatpush.msra.mxu0 0.0
        %1263 = vmatpush.msra.mxu0 0.0
        %1264 = vmatpush.msra.mxu0 0.0
        %1265 = vmatpush.msra.mxu0 0.0
        %1266 = vmatpush.msra.mxu0 0.0
        %1267 = vmatpush.msra.mxu0 0.0
        %1268 = vmatpush.msra.mxu0 0.0
        %1269 = vmatpush.msra.mxu0 0.0
        %1270 = vmatpush.msra.mxu0 0.0
        %1271 = vmatpush.msra.mxu0 0.0
        %1272 = vmatpush.msra.mxu0 0.0
        %1273 = vmatpush.msra.mxu0 %v1196
        %1274 = vmatmul.f32.gmra.mxu0 %v1250
        %v1275 = vpop.f32.mrf.mxu0
        %v1276 = vadd.f32 %v1237, %v1275
        %1277 = vmatmul.f32.gmra.mxu0 %v1253
        %v1278 = vpop.f32.mrf.mxu0
        %v1279 = vadd.f32 %v1242, %v1278
        %1280 = vmatmul.f32.gmra.mxu0 %v1256
        %v1281 = vpop.f32.mrf.mxu0
        %v1282 = vadd.f32 %v1247, %v1281
        %1283 = vdwg.mxu0
        %1284 = vmatpush.msra.mxu0 0.0
        %1285 = vmatpush.msra.mxu0 0.0
        %1286 = vmatpush.msra.mxu0 0.0
        %1287 = vmatpush.msra.mxu0 0.0
        %1288 = vmatpush.msra.mxu0 0.0
        %1289 = vmatpush.msra.mxu0 0.0
        %1290 = vmatpush.msra.mxu0 0.0
        %1291 = vmatpush.msra.mxu0 0.0
        %1292 = vmatpush.msra.mxu0 0.0
        %1293 = vmatpush.msra.mxu0 0.0
        %1294 = vmatpush.msra.mxu0 0.0
        %1295 = vmatpush.msra.mxu0 0.0
        %1296 = vmatpush.msra.mxu0 0.0
        %1297 = vmatpush.msra.mxu0 0.0
        %1298 = vmatpush.msra.mxu0 0.0
        %1299 = vmatpush.msra.mxu0 %v1197
        %1300 = vmatmul.f32.gmra.mxu0 %v1250
        %v1301 = vpop.f32.mrf.mxu0
        %v1302 = vadd.f32 %v1237, %v1301
        %1303 = vmatmul.f32.gmra.mxu0 %v1253
        %v1304 = vpop.f32.mrf.mxu0
        %v1305 = vadd.f32 %v1242, %v1304
        %1306 = vmatmul.f32.gmra.mxu0 %v1256
        %v1307 = vpop.f32.mrf.mxu0
        %v1308 = vadd.f32 %v1247, %v1307
        %1309 = vdwg.mxu0
        %v1310 = vmax.f32 %v1279, 0.0
        %v1311 = vmax.f32 %v1305, 0.0
        %v1312 = vand.u32 2147483647, %v1279
        %v1313 = vand.u32 2147483647, %v1305
        %v1314 = vsub.f32 0.0, %v1312
        %v1315 = vsub.f32 0.0, %v1313
        %v1316 = vmul.f32 %v1314, 1.442695
        %v1317 = vpow.pop %v1316
        %v1318 = vmul.f32 %v1315, 1.442695
        %v1319 = vpow.pop %v1318
        %v1320 = vadd.f32 %v1317, 1.0
        %v1321 = vlog2.pop %v1320
        %v1322 = vmul.f32 %v1321, 0.6931472
        %v1323 = vmul.f32 -0.5, %v1317
        %v1324 = vadd.f32 %v1323, 1.0
        %v1325 = vmul.f32 %v1324, %v1317
        %v1326 = vand.u32 2147483647, %v1317
        %vm1327 = vcmp.lt.f32.partialorder %v1326, 0.0004427343
        %v1328 = vsel %vm1327, %v1325, %v1322
        %v1329 = vadd.f32 %v1319, 1.0
        %v1330 = vlog2.pop %v1329
        %v1331 = vmul.f32 %v1330, 0.6931472
        %v1332 = vmul.f32 -0.5, %v1319
        %v1333 = vadd.f32 %v1332, 1.0
        %v1334 = vmul.f32 %v1333, %v1319
        %v1335 = vand.u32 2147483647, %v1319
        %vm1336 = vcmp.lt.f32.partialorder %v1335, 0.0004427343
        %v1337 = vsel %vm1336, %v1334, %v1331
        %v1338 = vadd.f32 %v1310, %v1328
        %v1339 = vadd.f32 %v1311, %v1337
        %v1340 = vld [vmem:[%s1 + $0x140] sm:$0xff]
        %v1341 = vld [vmem:[%s1 + $0x148] sm:$0xff]
        %v1342 = vld [vmem:[%s1 + $0x150] sm:$0xff]
        %v1343 = vld [vmem:[%s1 + $0x158] sm:$0xff]
        %v1344 = vld [vmem:[%s1 + $0x160] sm:$0xff]
        %v1345 = vld [vmem:[%s1 + $0x168] sm:$0xff]
        %v1346 = vld [vmem:[%s1 + $0xa8] sm:$0xff]
        %v1347 = vld [vmem:[%s1 + $0xb0] sm:$0xff]
        %v1348 = vmul.f32 %v974, %v1012
        %v1349 = vmul.f32 %v975, %v1038
        %vm1350 = vcmask 31744
        %v1352 = vsel %vm1350, %v1340, 0
        %vm1354 = vcmask 1043456
        %v1356 = vsel %vm1354, %v1348, 0
        %v1359 = vsel %vm1354, %v1349, 0
        %1361 = vmatpush.msra.mxu0 0.0
        %1362 = vmatpush.msra.mxu0 0.0
        %1363 = vmatpush.msra.mxu0 0.0
        %1364 = vmatpush.msra.mxu0 0.0
        %1365 = vmatpush.msra.mxu0 0.0
        %1366 = vmatpush.msra.mxu0 0.0
        %1367 = vmatpush.msra.mxu0 0.0
        %1368 = vmatpush.msra.mxu0 0.0
        %1369 = vmatpush.msra.mxu0 0.0
        %1370 = vmatpush.msra.mxu0 0.0
        %1371 = vmatpush.msra.mxu0 0.0
        %1372 = vmatpush.msra.mxu0 0.0
        %1373 = vmatpush.msra.mxu0 0.0
        %1374 = vmatpush.msra.mxu0 0.0
        %1375 = vmatpush.msra.mxu0 0.0
        %1376 = vmatpush.msra.mxu0 %v1356
        %1377 = vmatmul.f32.gmra.mxu0 %v1352
        %v1378 = vpop.f32.mrf.mxu0
        %v1379 = vadd.f32 0.0, %v1378
        %1380 = vdwg.mxu0
        %1381 = vmatpush.msra.mxu0 0.0
        %1382 = vmatpush.msra.mxu0 0.0
        %1383 = vmatpush.msra.mxu0 0.0
        %1384 = vmatpush.msra.mxu0 0.0
        %1385 = vmatpush.msra.mxu0 0.0
        %1386 = vmatpush.msra.mxu0 0.0
        %1387 = vmatpush.msra.mxu0 0.0
        %1388 = vmatpush.msra.mxu0 0.0
        %1389 = vmatpush.msra.mxu0 0.0
        %1390 = vmatpush.msra.mxu0 0.0
        %1391 = vmatpush.msra.mxu0 0.0
        %1392 = vmatpush.msra.mxu0 0.0
        %1393 = vmatpush.msra.mxu0 0.0
        %1394 = vmatpush.msra.mxu0 0.0
        %1395 = vmatpush.msra.mxu0 0.0
        %1396 = vmatpush.msra.mxu0 %v1359
        %1397 = vmatmul.f32.gmra.mxu0 %v1352
        %v1398 = vpop.f32.mrf.mxu0
        %v1399 = vadd.f32 0.0, %v1398
        %1400 = vdwg.mxu0
        %v1401 = vadd.f32 %v1009, %v1379
        %v1402 = vadd.f32 %v1035, %v1399
        %v1403 = vand.u32 2147483647, %v1401
        %v1404 = vand.u32 2147483647, %v1402
        %v1405 = vsub.f32 0.0, %v1403
        %v1406 = vsub.f32 0.0, %v1404
        %v1407 = vmul.f32 %v1405, 1.442695
        %v1408 = vpow.pop %v1407
        %v1409 = vmul.f32 %v1406, 1.442695
        %v1410 = vpow.pop %v1409
        %v1411 = vadd.f32 %v1408, 1.0
        %v1412 = vadd.f32 %v1410, 1.0
        %v1413 = vrcp.pop %v1411
        %v1414 = vmul.f32 %v1411, %v1413
        %v1415 = vsub.f32 1.0, %v1414
        %v1416 = vmul.f32 %v1413, %v1415
        %v1417 = vadd.f32 %v1413, %v1416
        %vm1418 = vweird.f32 %v1411
        %vm1419 = vweird.f32 %v1413
        %vm1420 = vmor %vm1418, %vm1419
        %v1421 = vsel %vm1420, %v1413, %v1417
        %v1422 = vand.u32 2147483647, %v1411
        %vm1423 = vcmp.eq.f32.partialorder %v1422, 8.507059e+37
        %v1424 = vand.u32 %v1411, 2147483648
        %v1425 = vor.u32 1.1754944e-38, %v1424
        %v1426 = vsel %vm1423, %v1425, %v1421
        %v1427 = vmul.f32 1.0, %v1426
        %v1428 = vrcp.pop %v1412
        %v1429 = vmul.f32 %v1412, %v1428
        %v1430 = vsub.f32 1.0, %v1429
        %v1431 = vmul.f32 %v1428, %v1430
        %v1432 = vadd.f32 %v1428, %v1431
        %vm1433 = vweird.f32 %v1412
        %vm1434 = vweird.f32 %v1428
        %vm1435 = vmor %vm1433, %vm1434
        %v1436 = vsel %vm1435, %v1428, %v1432
        %v1437 = vand.u32 2147483647, %v1412
        %vm1438 = vcmp.eq.f32.partialorder %v1437, 8.507059e+37
        %v1439 = vand.u32 %v1412, 2147483648
        %v1440 = vor.u32 1.1754944e-38, %v1439
        %v1441 = vsel %vm1438, %v1440, %v1436
        %v1442 = vmul.f32 1.0, %v1441
        %v1443 = vmax.f32 %v1401, 0.0
        %v1444 = vmax.f32 %v1402, 0.0
        %v1445 = vadd.f32 %v1408, 1.0
        %v1446 = vlog2.pop %v1445
        %v1447 = vmul.f32 %v1446, 0.6931472
        %v1448 = vmul.f32 -0.5, %v1408
        %v1449 = vadd.f32 %v1448, 1.0
        %v1450 = vmul.f32 %v1449, %v1408
        %v1451 = vand.u32 2147483647, %v1408
        %vm1452 = vcmp.lt.f32.partialorder %v1451, 0.0004427343
        %v1453 = vsel %vm1452, %v1450, %v1447
        %v1454 = vadd.f32 %v1410, 1.0
        %v1455 = vlog2.pop %v1454
        %v1456 = vmul.f32 %v1455, 0.6931472
        %v1457 = vmul.f32 -0.5, %v1410
        %v1458 = vadd.f32 %v1457, 1.0
        %v1459 = vmul.f32 %v1458, %v1410
        %v1460 = vand.u32 2147483647, %v1410
        %vm1461 = vcmp.lt.f32.partialorder %v1460, 0.0004427343
        %v1462 = vsel %vm1461, %v1459, %v1456
        %v1463 = vadd.f32 %v1443, %v1453
        %v1464 = vadd.f32 %v1444, %v1462
        %vm1465 = vcmp.ge.f32.partialorder %v1401, 0.0
        %vm1466 = vcmp.ge.f32.partialorder %v1402, 0.0
        %v1467 = vmul.f32 %v1408, %v1427
        %v1468 = vmul.f32 %v1410, %v1442
        %v1469 = vsel %vm1465, %v1427, %v1467
        %v1470 = vsel %vm1466, %v1442, %v1468
        %v1471 = vmul.f32 %v1463, %v1226
        %v1472 = vmul.f32 %v1464, %v1227
        %v1474 = vsel %vm283, %v1341, 0
        %1476 = vmatpush.msra.mxu0 0.0
        %1477 = vmatpush.msra.mxu0 0.0
        %1478 = vmatpush.msra.mxu0 0.0
        %1479 = vmatpush.msra.mxu0 0.0
        %1480 = vmatpush.msra.mxu0 0.0
        %1481 = vmatpush.msra.mxu0 0.0
        %1482 = vmatpush.msra.mxu0 0.0
        %1483 = vmatpush.msra.mxu0 0.0
        %1484 = vmatpush.msra.mxu0 0.0
        %1485 = vmatpush.msra.mxu0 0.0
        %1486 = vmatpush.msra.mxu0 0.0
        %1487 = vmatpush.msra.mxu0 0.0
        %1488 = vmatpush.msra.mxu0 0.0
        %1489 = vmatpush.msra.mxu0 0.0
        %1490 = vmatpush.msra.mxu0 0.0
        %1491 = vmatpush.msra.mxu0 %v1471
        %1492 = vmatmul.f32.gmra.mxu0 %v1474
        %v1493 = vpop.f32.mrf.mxu0
        %v1494 = vadd.f32 0.0, %v1493
        %1495 = vdwg.mxu0
        %1496 = vmatpush.msra.mxu0 0.0
        %1497 = vmatpush.msra.mxu0 0.0
        %1498 = vmatpush.msra.mxu0 0.0
        %1499 = vmatpush.msra.mxu0 0.0
        %1500 = vmatpush.msra.mxu0 0.0
        %1501 = vmatpush.msra.mxu0 0.0
        %1502 = vmatpush.msra.mxu0 0.0
        %1503 = vmatpush.msra.mxu0 0.0
        %1504 = vmatpush.msra.mxu0 0.0
        %1505 = vmatpush.msra.mxu0 0.0
        %1506 = vmatpush.msra.mxu0 0.0
        %1507 = vmatpush.msra.mxu0 0.0
        %1508 = vmatpush.msra.mxu0 0.0
        %1509 = vmatpush.msra.mxu0 0.0
        %1510 = vmatpush.msra.mxu0 0.0
        %1511 = vmatpush.msra.mxu0 %v1472
        %1512 = vmatmul.f32.gmra.mxu0 %v1474
        %v1513 = vpop.f32.mrf.mxu0
        %v1514 = vadd.f32 0.0, %v1513
        %1515 = vdwg.mxu0
        %v1516 = vadd.f32 %v1131, %v1494
        %v1517 = vadd.f32 %v1160, %v1514
        %v1518 = vmul.f32 %v974, %v1137
        %v1519 = vmul.f32 %v975, %v1166
        %v1521 = vsel %vm1350, %v1342, 0
        %v1524 = vsel %vm1354, %v1518, 0
        %v1527 = vsel %vm1354, %v1519, 0
        %1529 = vmatpush.msra.mxu0 0.0
        %1530 = vmatpush.msra.mxu0 0.0
        %1531 = vmatpush.msra.mxu0 0.0
        %1532 = vmatpush.msra.mxu0 0.0
        %1533 = vmatpush.msra.mxu0 0.0
        %1534 = vmatpush.msra.mxu0 0.0
        %1535 = vmatpush.msra.mxu0 0.0
        %1536 = vmatpush.msra.mxu0 0.0
        %1537 = vmatpush.msra.mxu0 0.0
        %1538 = vmatpush.msra.mxu0 0.0
        %1539 = vmatpush.msra.mxu0 0.0
        %1540 = vmatpush.msra.mxu0 0.0
        %1541 = vmatpush.msra.mxu0 0.0
        %1542 = vmatpush.msra.mxu0 0.0
        %1543 = vmatpush.msra.mxu0 0.0
        %1544 = vmatpush.msra.mxu0 %v1524
        %1545 = vmatmul.f32.gmra.mxu0 %v1521
        %v1546 = vpop.f32.mrf.mxu0
        %v1547 = vadd.f32 0.0, %v1546
        %1548 = vdwg.mxu0
        %1549 = vmatpush.msra.mxu0 0.0
        %1550 = vmatpush.msra.mxu0 0.0
        %1551 = vmatpush.msra.mxu0 0.0
        %1552 = vmatpush.msra.mxu0 0.0
        %1553 = vmatpush.msra.mxu0 0.0
        %1554 = vmatpush.msra.mxu0 0.0
        %1555 = vmatpush.msra.mxu0 0.0
        %1556 = vmatpush.msra.mxu0 0.0
        %1557 = vmatpush.msra.mxu0 0.0
        %1558 = vmatpush.msra.mxu0 0.0
        %1559 = vmatpush.msra.mxu0 0.0
        %1560 = vmatpush.msra.mxu0 0.0
        %1561 = vmatpush.msra.mxu0 0.0
        %1562 = vmatpush.msra.mxu0 0.0
        %1563 = vmatpush.msra.mxu0 0.0
        %1564 = vmatpush.msra.mxu0 %v1527
        %1565 = vmatmul.f32.gmra.mxu0 %v1521
        %v1566 = vpop.f32.mrf.mxu0
        %v1567 = vadd.f32 0.0, %v1566
        %1568 = vdwg.mxu0
        %v1569 = vadd.f32 %v1516, %v1547
        %v1570 = vadd.f32 %v1517, %v1567
        %v1571 = vand.u32 2147483647, %v1569
        %v1572 = vand.u32 2147483647, %v1570
        %v1573 = vsub.f32 0.0, %v1571
        %v1574 = vsub.f32 0.0, %v1572
        %v1575 = vmul.f32 %v1573, 1.442695
        %v1576 = vpow.pop %v1575
        %v1577 = vmul.f32 %v1574, 1.442695
        %v1578 = vpow.pop %v1577
        %v1579 = vadd.f32 %v1576, 1.0
        %v1580 = vadd.f32 %v1578, 1.0
        %v1581 = vrcp.pop %v1579
        %v1582 = vmul.f32 %v1579, %v1581
        %v1583 = vsub.f32 1.0, %v1582
        %v1584 = vmul.f32 %v1581, %v1583
        %v1585 = vadd.f32 %v1581, %v1584
        %vm1586 = vweird.f32 %v1579
        %vm1587 = vweird.f32 %v1581
        %vm1588 = vmor %vm1586, %vm1587
        %v1589 = vsel %vm1588, %v1581, %v1585
        %v1590 = vand.u32 2147483647, %v1579
        %vm1591 = vcmp.eq.f32.partialorder %v1590, 8.507059e+37
        %v1592 = vand.u32 %v1579, 2147483648
        %v1593 = vor.u32 1.1754944e-38, %v1592
        %v1594 = vsel %vm1591, %v1593, %v1589
        %v1595 = vmul.f32 1.0, %v1594
        %v1596 = vrcp.pop %v1580
        %v1597 = vmul.f32 %v1580, %v1596
        %v1598 = vsub.f32 1.0, %v1597
        %v1599 = vmul.f32 %v1596, %v1598
        %v1600 = vadd.f32 %v1596, %v1599
        %vm1601 = vweird.f32 %v1580
        %vm1602 = vweird.f32 %v1596
        %vm1603 = vmor %vm1601, %vm1602
        %v1604 = vsel %vm1603, %v1596, %v1600
        %v1605 = vand.u32 2147483647, %v1580
        %vm1606 = vcmp.eq.f32.partialorder %v1605, 8.507059e+37
        %v1607 = vand.u32 %v1580, 2147483648
        %v1608 = vor.u32 1.1754944e-38, %v1607
        %v1609 = vsel %vm1606, %v1608, %v1604
        %v1610 = vmul.f32 1.0, %v1609
        %v1611 = vmax.f32 %v1569, 0.0
        %v1612 = vmax.f32 %v1570, 0.0
        %v1613 = vadd.f32 %v1576, 1.0
        %v1614 = vlog2.pop %v1613
        %v1615 = vmul.f32 %v1614, 0.6931472
        %v1616 = vmul.f32 -0.5, %v1576
        %v1617 = vadd.f32 %v1616, 1.0
        %v1618 = vmul.f32 %v1617, %v1576
        %v1619 = vand.u32 2147483647, %v1576
        %vm1620 = vcmp.lt.f32.partialorder %v1619, 0.0004427343
        %v1621 = vsel %vm1620, %v1618, %v1615
        %v1622 = vadd.f32 %v1578, 1.0
        %v1623 = vlog2.pop %v1622
        %v1624 = vmul.f32 %v1623, 0.6931472
        %v1625 = vmul.f32 -0.5, %v1578
        %v1626 = vadd.f32 %v1625, 1.0
        %v1627 = vmul.f32 %v1626, %v1578
        %v1628 = vand.u32 2147483647, %v1578
        %vm1629 = vcmp.lt.f32.partialorder %v1628, 0.0004427343
        %v1630 = vsel %vm1629, %v1627, %v1624
        %v1631 = vadd.f32 %v1611, %v1621
        %v1632 = vadd.f32 %v1612, %v1630
        %vm1633 = vcmp.ge.f32.partialorder %v1569, 0.0
        %vm1634 = vcmp.ge.f32.partialorder %v1570, 0.0
        %v1635 = vmul.f32 %v1576, %v1595
        %v1636 = vmul.f32 %v1578, %v1610
        %v1637 = vsel %vm1633, %v1595, %v1635
        %v1638 = vsel %vm1634, %v1610, %v1636
        %v1639 = vmul.f32 %v1631, %v1338
        %v1640 = vmul.f32 %v1632, %v1339
        %1642 = vset.pattern.permute.xlu0 0
        %1643 = vperm.xlu0 %1642, %v1346
        %v1644 = vpop.permute.xlu0 %1643
        %v1646 = vmul.f32 %v1644, %v1639
        %v1647 = vmul.f32 %v1644, %v1640
        %v1648 = vrot.slane %v1646, 4
        %v1649 = vadd.f32 %v1646, %v1648
        %v1650 = vrot.slane %v1649, 2
        %v1651 = vadd.f32 %v1649, %v1650
        %v1652 = vrot.slane %v1651, 1
        %v1653 = vadd.f32 %v1651, %v1652
        %v1654 = vrot.slane %v1647, 4
        %v1655 = vadd.f32 %v1647, %v1654
        %v1656 = vrot.slane %v1655, 2
        %v1657 = vadd.f32 %v1655, %v1656
        %v1658 = vrot.slane %v1657, 1
        %v1659 = vadd.f32 %v1657, %v1658
        %v1660 = vadd.f32 %v1276, %v1653
        %v1661 = vadd.f32 %v1302, %v1659
        %v1662 = vmul.f32 %v974, %v1282
        %v1663 = vmul.f32 %v975, %v1308
        %1665 = vset.pattern.permute.xlu0 0
        %1666 = vperm.xlu0 %1665, %v1347
        %v1667 = vpop.permute.xlu0 %1666
        %v1669 = vmul.f32 %v1667, %v1662
        %v1670 = vmul.f32 %v1667, %v1663
        %v1671 = vsel %vm1354, %v1669, 0.0
        %v1672 = vrot.slane %v1671, 4
        %v1673 = vadd.f32 %v1671, %v1672
        %v1674 = vrot.slane %v1673, 2
        %v1675 = vadd.f32 %v1673, %v1674
        %v1676 = vrot.slane %v1675, 1
        %v1677 = vadd.f32 %v1675, %v1676
        %v1678 = vsel %vm1354, %v1670, 0.0
        %v1679 = vrot.slane %v1678, 4
        %v1680 = vadd.f32 %v1678, %v1679
        %v1681 = vrot.slane %v1680, 2
        %v1682 = vadd.f32 %v1680, %v1681
        %v1683 = vrot.slane %v1682, 1
        %v1684 = vadd.f32 %v1682, %v1683
        %v1685 = vadd.f32 %v1660, %v1677
        %v1686 = vadd.f32 %v1661, %v1684
        %v1687 = vand.u32 2147483647, %v1685
        %v1688 = vand.u32 2147483647, %v1686
        %v1689 = vsub.f32 0.0, %v1687
        %v1690 = vsub.f32 0.0, %v1688
        %v1691 = vmul.f32 %v1689, 1.442695
        %v1692 = vpow.pop %v1691
        %v1693 = vmul.f32 %v1690, 1.442695
        %v1694 = vpow.pop %v1693
        %vm1695 = vcmp.ge.f32.partialorder %v1685, 0.0
        %vm1696 = vcmp.ge.f32.partialorder %v1686, 0.0
        %v1697 = vsel %vm1695, 1.0, %v1692
        %v1698 = vsel %vm1696, 1.0, %v1694
        %v1699 = vadd.f32 %v1692, 1.0
        %v1700 = vadd.f32 %v1694, 1.0
        %v1701 = vrcp.pop %v1699
        %v1702 = vmul.f32 %v1699, %v1701
        %v1703 = vsub.f32 1.0, %v1702
        %v1704 = vmul.f32 %v1701, %v1703
        %v1705 = vadd.f32 %v1701, %v1704
        %vm1706 = vweird.f32 %v1699
        %vm1707 = vweird.f32 %v1701
        %vm1708 = vmor %vm1706, %vm1707
        %v1709 = vsel %vm1708, %v1701, %v1705
        %v1710 = vand.u32 2147483647, %v1699
        %vm1711 = vcmp.eq.f32.partialorder %v1710, 8.507059e+37
        %v1712 = vand.u32 %v1699, 2147483648
        %v1713 = vor.u32 1.1754944e-38, %v1712
        %v1714 = vsel %vm1711, %v1713, %v1709
        %v1715 = vmul.f32 %v1697, %v1714
        %v1716 = vrcp.pop %v1700
        %v1717 = vmul.f32 %v1700, %v1716
        %v1718 = vsub.f32 1.0, %v1717
        %v1719 = vmul.f32 %v1716, %v1718
        %v1720 = vadd.f32 %v1716, %v1719
        %vm1721 = vweird.f32 %v1700
        %vm1722 = vweird.f32 %v1716
        %vm1723 = vmor %vm1721, %vm1722
        %v1724 = vsel %vm1723, %v1716, %v1720
        %v1725 = vand.u32 2147483647, %v1700
        %vm1726 = vcmp.eq.f32.partialorder %v1725, 8.507059e+37
        %v1727 = vand.u32 %v1700, 2147483648
        %v1728 = vor.u32 1.1754944e-38, %v1727
        %v1729 = vsel %vm1726, %v1728, %v1724
        %v1730 = vmul.f32 %v1698, %v1729
        %v1731 = vperm.slane %v1715, 0
        %v1732 = vperm.slane %v1730, 0
        %v1733 = vmul.f32 %v1667, %v1731
        %v1734 = vmul.f32 %v1667, %v1732
        %v1735 = vmul.f32 %v1733, %v1282
        %v1736 = vmul.f32 %v1734, %v1308
        %v1737 = vmul.f32 %v1644, %v1731
        %v1738 = vmul.f32 %v1644, %v1732
        %v1739 = vmul.f32 %v1737, %v1338
        %v1740 = vmul.f32 %v1738, %v1339
        %v1741 = vmul.f32 %v1739, %v1637
        %v1742 = vmul.f32 %v1740, %v1638
        %v1744 = vsel %vm283, %v1343, 0
        %v1747 = vsel %vm283, %v1344, 0
        %1749 = vmatpush.msra.mxu0 0.0
        %1750 = vmatpush.msra.mxu0 0.0
        %1751 = vmatpush.msra.mxu0 0.0
        %1752 = vmatpush.msra.mxu0 0.0
        %1753 = vmatpush.msra.mxu0 0.0
        %1754 = vmatpush.msra.mxu0 0.0
        %1755 = vmatpush.msra.mxu0 0.0
        %1756 = vmatpush.msra.mxu0 0.0
        %1757 = vmatpush.msra.mxu0 0.0
        %1758 = vmatpush.msra.mxu0 0.0
        %1759 = vmatpush.msra.mxu0 0.0
        %1760 = vmatpush.msra.mxu0 0.0
        %1761 = vmatpush.msra.mxu0 0.0
        %1762 = vmatpush.msra.mxu0 0.0
        %1763 = vmatpush.msra.mxu0 0.0
        %1764 = vmatpush.msra.mxu0 %v1741
        %1765 = vmatmul.f32.gmra.mxu0 %v1744
        %v1766 = vpop.f32.mrf.mxu0
        %v1767 = vadd.f32 0.0, %v1766
        %1768 = vmatmul.f32.gmra.mxu0 %v1747
        %v1769 = vpop.f32.mrf.mxu0
        %v1770 = vadd.f32 0.0, %v1769
        %1771 = vdwg.mxu0
        %1772 = vmatpush.msra.mxu0 0.0
        %1773 = vmatpush.msra.mxu0 0.0
        %1774 = vmatpush.msra.mxu0 0.0
        %1775 = vmatpush.msra.mxu0 0.0
        %1776 = vmatpush.msra.mxu0 0.0
        %1777 = vmatpush.msra.mxu0 0.0
        %1778 = vmatpush.msra.mxu0 0.0
        %1779 = vmatpush.msra.mxu0 0.0
        %1780 = vmatpush.msra.mxu0 0.0
        %1781 = vmatpush.msra.mxu0 0.0
        %1782 = vmatpush.msra.mxu0 0.0
        %1783 = vmatpush.msra.mxu0 0.0
        %1784 = vmatpush.msra.mxu0 0.0
        %1785 = vmatpush.msra.mxu0 0.0
        %1786 = vmatpush.msra.mxu0 0.0
        %1787 = vmatpush.msra.mxu0 %v1742
        %1788 = vmatmul.f32.gmra.mxu0 %v1744
        %v1789 = vpop.f32.mrf.mxu0
        %v1790 = vadd.f32 0.0, %v1789
        %1791 = vmatmul.f32.gmra.mxu0 %v1747
        %v1792 = vpop.f32.mrf.mxu0
        %v1793 = vadd.f32 0.0, %v1792
        %1794 = vdwg.mxu0
        %v1795 = vmul.f32 %v1770, %v1137
        %v1796 = vmul.f32 %v1793, %v1166
        %v1797 = vadd.f32 %v1735, %v1795
        %v1798 = vadd.f32 %v1736, %v1796
        %v1799 = vmul.f32 %v1767, %v1226
        %v1800 = vmul.f32 %v1790, %v1227
        %v1801 = vmul.f32 %v1799, %v1469
        %v1802 = vmul.f32 %v1800, %v1470
        %v1804 = vsel %vm283, %v1345, 0
        %1806 = vmatpush.msra.mxu0 0.0
        %1807 = vmatpush.msra.mxu0 0.0
        %1808 = vmatpush.msra.mxu0 0.0
        %1809 = vmatpush.msra.mxu0 0.0
        %1810 = vmatpush.msra.mxu0 0.0
        %1811 = vmatpush.msra.mxu0 0.0
        %1812 = vmatpush.msra.mxu0 0.0
        %1813 = vmatpush.msra.mxu0 0.0
        %1814 = vmatpush.msra.mxu0 0.0
        %1815 = vmatpush.msra.mxu0 0.0
        %1816 = vmatpush.msra.mxu0 0.0
        %1817 = vmatpush.msra.mxu0 0.0
        %1818 = vmatpush.msra.mxu0 0.0
        %1819 = vmatpush.msra.mxu0 0.0
        %1820 = vmatpush.msra.mxu0 0.0
        %1821 = vmatpush.msra.mxu0 %v1801
        %1822 = vmatmul.f32.gmra.mxu0 %v1804
        %v1823 = vpop.f32.mrf.mxu0
        %v1824 = vadd.f32 0.0, %v1823
        %1825 = vdwg.mxu0
        %1826 = vmatpush.msra.mxu0 0.0
        %1827 = vmatpush.msra.mxu0 0.0
        %1828 = vmatpush.msra.mxu0 0.0
        %1829 = vmatpush.msra.mxu0 0.0
        %1830 = vmatpush.msra.mxu0 0.0
        %1831 = vmatpush.msra.mxu0 0.0
        %1832 = vmatpush.msra.mxu0 0.0
        %1833 = vmatpush.msra.mxu0 0.0
        %1834 = vmatpush.msra.mxu0 0.0
        %1835 = vmatpush.msra.mxu0 0.0
        %1836 = vmatpush.msra.mxu0 0.0
        %1837 = vmatpush.msra.mxu0 0.0
        %1838 = vmatpush.msra.mxu0 0.0
        %1839 = vmatpush.msra.mxu0 0.0
        %1840 = vmatpush.msra.mxu0 0.0
        %1841 = vmatpush.msra.mxu0 %v1802
        %1842 = vmatmul.f32.gmra.mxu0 %v1804
        %v1843 = vpop.f32.mrf.mxu0
        %v1844 = vadd.f32 0.0, %v1843
        %1845 = vdwg.mxu0
        %v1846 = vmul.f32 %v1824, %v1012
        %v1847 = vmul.f32 %v1844, %v1038
        %v1848 = vadd.f32 %v1797, %v1846
        %v1849 = vadd.f32 %v1798, %v1847
        %v1850 = vand.u32 2147483647, %v1009
        %v1851 = vand.u32 2147483647, %v1035
        %v1852 = vsub.f32 0.0, %v1850
        %v1853 = vsub.f32 0.0, %v1851
        %v1854 = vmul.f32 %v1852, 1.442695
        %v1855 = vpow.pop %v1854
        %v1856 = vmul.f32 %v1853, 1.442695
        %v1857 = vpow.pop %v1856
        %v1858 = vadd.f32 %v1855, 1.0
        %v1859 = vadd.f32 %v1857, 1.0
        %v1860 = vrcp.pop %v1858
        %v1861 = vmul.f32 %v1858, %v1860
        %v1862 = vsub.f32 1.0, %v1861
        %v1863 = vmul.f32 %v1860, %v1862
        %v1864 = vadd.f32 %v1860, %v1863
        %vm1865 = vweird.f32 %v1858
        %vm1866 = vweird.f32 %v1860
        %vm1867 = vmor %vm1865, %vm1866
        %v1868 = vsel %vm1867, %v1860, %v1864
        %v1869 = vand.u32 2147483647, %v1858
        %vm1870 = vcmp.eq.f32.partialorder %v1869, 8.507059e+37
        %v1871 = vand.u32 %v1858, 2147483648
        %v1872 = vor.u32 1.1754944e-38, %v1871
        %v1873 = vsel %vm1870, %v1872, %v1868
        %v1874 = vmul.f32 1.0, %v1873
        %v1875 = vrcp.pop %v1859
        %v1876 = vmul.f32 %v1859, %v1875
        %v1877 = vsub.f32 1.0, %v1876
        %v1878 = vmul.f32 %v1875, %v1877
        %v1879 = vadd.f32 %v1875, %v1878
        %vm1880 = vweird.f32 %v1859
        %vm1881 = vweird.f32 %v1875
        %vm1882 = vmor %vm1880, %vm1881
        %v1883 = vsel %vm1882, %v1875, %v1879
        %v1884 = vand.u32 2147483647, %v1859
        %vm1885 = vcmp.eq.f32.partialorder %v1884, 8.507059e+37
        %v1886 = vand.u32 %v1859, 2147483648
        %v1887 = vor.u32 1.1754944e-38, %v1886
        %v1888 = vsel %vm1885, %v1887, %v1883
        %v1889 = vmul.f32 1.0, %v1888
        %v1890 = vmax.f32 %v1009, 0.0
        %v1891 = vmax.f32 %v1035, 0.0
        %v1892 = vadd.f32 %v1855, 1.0
        %v1893 = vlog2.pop %v1892
        %v1894 = vmul.f32 %v1893, 0.6931472
        %v1895 = vmul.f32 -0.5, %v1855
        %v1896 = vadd.f32 %v1895, 1.0
        %v1897 = vmul.f32 %v1896, %v1855
        %v1898 = vand.u32 2147483647, %v1855
        %vm1899 = vcmp.lt.f32.partialorder %v1898, 0.0004427343
        %v1900 = vsel %vm1899, %v1897, %v1894
        %v1901 = vadd.f32 %v1857, 1.0
        %v1902 = vlog2.pop %v1901
        %v1903 = vmul.f32 %v1902, 0.6931472
        %v1904 = vmul.f32 -0.5, %v1857
        %v1905 = vadd.f32 %v1904, 1.0
        %v1906 = vmul.f32 %v1905, %v1857
        %v1907 = vand.u32 2147483647, %v1857
        %vm1908 = vcmp.lt.f32.partialorder %v1907, 0.0004427343
        %v1909 = vsel %vm1908, %v1906, %v1903
        %v1910 = vadd.f32 %v1890, %v1900
        %v1911 = vadd.f32 %v1891, %v1909
        %vm1912 = vcmp.ge.f32.partialorder %v1009, 0.0
        %vm1913 = vcmp.ge.f32.partialorder %v1035, 0.0
        %v1914 = vmul.f32 %v1855, %v1874
        %v1915 = vmul.f32 %v1857, %v1889
        %v1916 = vsel %vm1912, %v1874, %v1914
        %v1917 = vsel %vm1913, %v1889, %v1915
        %v1918 = vmul.f32 %v1910, %v1226
        %v1919 = vmul.f32 %v1911, %v1227
        %1920 = vmatpush.msra.mxu0 0.0
        %1921 = vmatpush.msra.mxu0 0.0
        %1922 = vmatpush.msra.mxu0 0.0
        %1923 = vmatpush.msra.mxu0 0.0
        %1924 = vmatpush.msra.mxu0 0.0
        %1925 = vmatpush.msra.mxu0 0.0
        %1926 = vmatpush.msra.mxu0 0.0
        %1927 = vmatpush.msra.mxu0 0.0
        %1928 = vmatpush.msra.mxu0 0.0
        %1929 = vmatpush.msra.mxu0 0.0
        %1930 = vmatpush.msra.mxu0 0.0
        %1931 = vmatpush.msra.mxu0 0.0
        %1932 = vmatpush.msra.mxu0 0.0
        %1933 = vmatpush.msra.mxu0 0.0
        %1934 = vmatpush.msra.mxu0 0.0
        %1935 = vmatpush.msra.mxu0 %v1918
        %1936 = vmatmul.f32.gmra.mxu0 %v1474
        %v1937 = vpop.f32.mrf.mxu0
        %v1938 = vadd.f32 0.0, %v1937
        %1939 = vdwg.mxu0
        %1940 = vmatpush.msra.mxu0 0.0
        %1941 = vmatpush.msra.mxu0 0.0
        %1942 = vmatpush.msra.mxu0 0.0
        %1943 = vmatpush.msra.mxu0 0.0
        %1944 = vmatpush.msra.mxu0 0.0
        %1945 = vmatpush.msra.mxu0 0.0
        %1946 = vmatpush.msra.mxu0 0.0
        %1947 = vmatpush.msra.mxu0 0.0
        %1948 = vmatpush.msra.mxu0 0.0
        %1949 = vmatpush.msra.mxu0 0.0
        %1950 = vmatpush.msra.mxu0 0.0
        %1951 = vmatpush.msra.mxu0 0.0
        %1952 = vmatpush.msra.mxu0 0.0
        %1953 = vmatpush.msra.mxu0 0.0
        %1954 = vmatpush.msra.mxu0 0.0
        %1955 = vmatpush.msra.mxu0 %v1919
        %1956 = vmatmul.f32.gmra.mxu0 %v1474
        %v1957 = vpop.f32.mrf.mxu0
        %v1958 = vadd.f32 0.0, %v1957
        %1959 = vdwg.mxu0
        %v1960 = vadd.f32 %v1131, %v1938
        %v1961 = vadd.f32 %v1160, %v1958
        %v1962 = vand.u32 2147483647, %v1960
        %v1963 = vand.u32 2147483647, %v1961
        %v1964 = vsub.f32 0.0, %v1962
        %v1965 = vsub.f32 0.0, %v1963
        %v1966 = vmul.f32 %v1964, 1.442695
        %v1967 = vpow.pop %v1966
        %v1968 = vmul.f32 %v1965, 1.442695
        %v1969 = vpow.pop %v1968
        %v1970 = vadd.f32 %v1967, 1.0
        %v1971 = vadd.f32 %v1969, 1.0
        %v1972 = vrcp.pop %v1970
        %v1973 = vmul.f32 %v1970, %v1972
        %v1974 = vsub.f32 1.0, %v1973
        %v1975 = vmul.f32 %v1972, %v1974
        %v1976 = vadd.f32 %v1972, %v1975
        %vm1977 = vweird.f32 %v1970
        %vm1978 = vweird.f32 %v1972
        %vm1979 = vmor %vm1977, %vm1978
        %v1980 = vsel %vm1979, %v1972, %v1976
        %v1981 = vand.u32 2147483647, %v1970
        %vm1982 = vcmp.eq.f32.partialorder %v1981, 8.507059e+37
        %v1983 = vand.u32 %v1970, 2147483648
        %v1984 = vor.u32 1.1754944e-38, %v1983
        %v1985 = vsel %vm1982, %v1984, %v1980
        %v1986 = vmul.f32 1.0, %v1985
        %v1987 = vrcp.pop %v1971
        %v1988 = vmul.f32 %v1971, %v1987
        %v1989 = vsub.f32 1.0, %v1988
        %v1990 = vmul.f32 %v1987, %v1989
        %v1991 = vadd.f32 %v1987, %v1990
        %vm1992 = vweird.f32 %v1971
        %vm1993 = vweird.f32 %v1987
        %vm1994 = vmor %vm1992, %vm1993
        %v1995 = vsel %vm1994, %v1987, %v1991
        %v1996 = vand.u32 2147483647, %v1971
        %vm1997 = vcmp.eq.f32.partialorder %v1996, 8.507059e+37
        %v1998 = vand.u32 %v1971, 2147483648
        %v1999 = vor.u32 1.1754944e-38, %v1998
        %v2000 = vsel %vm1997, %v1999, %v1995
        %v2001 = vmul.f32 1.0, %v2000
        %v2002 = vmax.f32 %v1960, 0.0
        %v2003 = vmax.f32 %v1961, 0.0
        %v2004 = vadd.f32 %v1967, 1.0
        %v2005 = vlog2.pop %v2004
        %v2006 = vmul.f32 %v2005, 0.6931472
        %v2007 = vmul.f32 -0.5, %v1967
        %v2008 = vadd.f32 %v2007, 1.0
        %v2009 = vmul.f32 %v2008, %v1967
        %v2010 = vand.u32 2147483647, %v1967
        %vm2011 = vcmp.lt.f32.partialorder %v2010, 0.0004427343
        %v2012 = vsel %vm2011, %v2009, %v2006
        %v2013 = vadd.f32 %v1969, 1.0
        %v2014 = vlog2.pop %v2013
        %v2015 = vmul.f32 %v2014, 0.6931472
        %v2016 = vmul.f32 -0.5, %v1969
        %v2017 = vadd.f32 %v2016, 1.0
        %v2018 = vmul.f32 %v2017, %v1969
        %v2019 = vand.u32 2147483647, %v1969
        %vm2020 = vcmp.lt.f32.partialorder %v2019, 0.0004427343
        %v2021 = vsel %vm2020, %v2018, %v2015
        %v2022 = vadd.f32 %v2002, %v2012
        %v2023 = vadd.f32 %v2003, %v2021
        %vm2024 = vcmp.ge.f32.partialorder %v1960, 0.0
        %vm2025 = vcmp.ge.f32.partialorder %v1961, 0.0
        %v2026 = vmul.f32 %v1967, %v1986
        %v2027 = vmul.f32 %v1969, %v2001
        %v2028 = vsel %vm2024, %v1986, %v2026
        %v2029 = vsel %vm2025, %v2001, %v2027
        %v2030 = vmul.f32 %v2022, %v1338
        %v2031 = vmul.f32 %v2023, %v1339
        %v2032 = vmul.f32 %v1644, %v2030
        %v2033 = vmul.f32 %v1644, %v2031
        %v2034 = vrot.slane %v2032, 4
        %v2035 = vadd.f32 %v2032, %v2034
        %v2036 = vrot.slane %v2035, 2
        %v2037 = vadd.f32 %v2035, %v2036
        %v2038 = vrot.slane %v2037, 1
        %v2039 = vadd.f32 %v2037, %v2038
        %v2040 = vrot.slane %v2033, 4
        %v2041 = vadd.f32 %v2033, %v2040
        %v2042 = vrot.slane %v2041, 2
        %v2043 = vadd.f32 %v2041, %v2042
        %v2044 = vrot.slane %v2043, 1
        %v2045 = vadd.f32 %v2043, %v2044
        %v2046 = vadd.f32 %v1276, %v2039
        %v2047 = vadd.f32 %v1302, %v2045
        %v2048 = vand.u32 2147483647, %v2046
        %v2049 = vand.u32 2147483647, %v2047
        %v2050 = vsub.f32 0.0, %v2048
        %v2051 = vsub.f32 0.0, %v2049
        %v2052 = vmul.f32 %v2050, 1.442695
        %v2053 = vpow.pop %v2052
        %v2054 = vmul.f32 %v2051, 1.442695
        %v2055 = vpow.pop %v2054
        %vm2056 = vcmp.ge.f32.partialorder %v2046, 0.0
        %vm2057 = vcmp.ge.f32.partialorder %v2047, 0.0
        %v2058 = vsel %vm2056, 1.0, %v2053
        %v2059 = vsel %vm2057, 1.0, %v2055
        %v2060 = vadd.f32 %v2053, 1.0
        %v2061 = vadd.f32 %v2055, 1.0
        %v2062 = vrcp.pop %v2060
        %v2063 = vmul.f32 %v2060, %v2062
        %v2064 = vsub.f32 1.0, %v2063
        %v2065 = vmul.f32 %v2062, %v2064
        %v2066 = vadd.f32 %v2062, %v2065
        %vm2067 = vweird.f32 %v2060
        %vm2068 = vweird.f32 %v2062
        %vm2069 = vmor %vm2067, %vm2068
        %v2070 = vsel %vm2069, %v2062, %v2066
        %v2071 = vand.u32 2147483647, %v2060
        %vm2072 = vcmp.eq.f32.partialorder %v2071, 8.507059e+37
        %v2073 = vand.u32 %v2060, 2147483648
        %v2074 = vor.u32 1.1754944e-38, %v2073
        %v2075 = vsel %vm2072, %v2074, %v2070
        %v2076 = vmul.f32 %v2058, %v2075
        %v2077 = vrcp.pop %v2061
        %v2078 = vmul.f32 %v2061, %v2077
        %v2079 = vsub.f32 1.0, %v2078
        %v2080 = vmul.f32 %v2077, %v2079
        %v2081 = vadd.f32 %v2077, %v2080
        %vm2082 = vweird.f32 %v2061
        %vm2083 = vweird.f32 %v2077
        %vm2084 = vmor %vm2082, %vm2083
        %v2085 = vsel %vm2084, %v2077, %v2081
        %v2086 = vand.u32 2147483647, %v2061
        %vm2087 = vcmp.eq.f32.partialorder %v2086, 8.507059e+37
        %v2088 = vand.u32 %v2061, 2147483648
        %v2089 = vor.u32 1.1754944e-38, %v2088
        %v2090 = vsel %vm2087, %v2089, %v2085
        %v2091 = vmul.f32 %v2059, %v2090
        %v2092 = vperm.slane %v2076, 0
        %v2093 = vperm.slane %v2091, 0
        %v2094 = vmul.f32 %v1667, %v2092
        %v2095 = vmul.f32 %v1667, %v2093
        %v2096 = vmul.f32 %v2094, %v1282
        %v2097 = vmul.f32 %v2095, %v1308
        %v2098 = vmul.f32 %v1644, %v2092
        %v2099 = vmul.f32 %v1644, %v2093
        %v2100 = vmul.f32 %v2098, %v1338
        %v2101 = vmul.f32 %v2099, %v1339
        %v2102 = vmul.f32 %v2100, %v2028
        %v2103 = vmul.f32 %v2101, %v2029
        %2104 = vmatpush.msra.mxu0 0.0
        %2105 = vmatpush.msra.mxu0 0.0
        %2106 = vmatpush.msra.mxu0 0.0
        %2107 = vmatpush.msra.mxu0 0.0
        %2108 = vmatpush.msra.mxu0 0.0
        %2109 = vmatpush.msra.mxu0 0.0
        %2110 = vmatpush.msra.mxu0 0.0
        %2111 = vmatpush.msra.mxu0 0.0
        %2112 = vmatpush.msra.mxu0 0.0
        %2113 = vmatpush.msra.mxu0 0.0
        %2114 = vmatpush.msra.mxu0 0.0
        %2115 = vmatpush.msra.mxu0 0.0
        %2116 = vmatpush.msra.mxu0 0.0
        %2117 = vmatpush.msra.mxu0 0.0
        %2118 = vmatpush.msra.mxu0 0.0
        %2119 = vmatpush.msra.mxu0 %v2102
        %2120 = vmatmul.f32.gmra.mxu0 %v1744
        %v2121 = vpop.f32.mrf.mxu0
        %v2122 = vadd.f32 0.0, %v2121
        %2123 = vmatmul.f32.gmra.mxu0 %v1747
        %v2124 = vpop.f32.mrf.mxu0
        %v2125 = vadd.f32 0.0, %v2124
        %2126 = vdwg.mxu0
        %2127 = vmatpush.msra.mxu0 0.0
        %2128 = vmatpush.msra.mxu0 0.0
        %2129 = vmatpush.msra.mxu0 0.0
        %2130 = vmatpush.msra.mxu0 0.0
        %2131 = vmatpush.msra.mxu0 0.0
        %2132 = vmatpush.msra.mxu0 0.0
        %2133 = vmatpush.msra.mxu0 0.0
        %2134 = vmatpush.msra.mxu0 0.0
        %2135 = vmatpush.msra.mxu0 0.0
        %2136 = vmatpush.msra.mxu0 0.0
        %2137 = vmatpush.msra.mxu0 0.0
        %2138 = vmatpush.msra.mxu0 0.0
        %2139 = vmatpush.msra.mxu0 0.0
        %2140 = vmatpush.msra.mxu0 0.0
        %2141 = vmatpush.msra.mxu0 0.0
        %2142 = vmatpush.msra.mxu0 %v2103
        %2143 = vmatmul.f32.gmra.mxu0 %v1744
        %v2144 = vpop.f32.mrf.mxu0
        %v2145 = vadd.f32 0.0, %v2144
        %2146 = vmatmul.f32.gmra.mxu0 %v1747
        %v2147 = vpop.f32.mrf.mxu0
        %v2148 = vadd.f32 0.0, %v2147
        %2149 = vdwg.mxu0
        %v2150 = vmul.f32 %v2125, %v1137
        %v2151 = vmul.f32 %v2148, %v1166
        %v2152 = vadd.f32 %v2096, %v2150
        %v2153 = vadd.f32 %v2097, %v2151
        %v2154 = vmul.f32 %v2122, %v1226
        %v2155 = vmul.f32 %v2145, %v1227
        %v2156 = vmul.f32 %v2154, %v1916
        %v2157 = vmul.f32 %v2155, %v1917
        %2158 = vmatpush.msra.mxu0 0.0
        %2159 = vmatpush.msra.mxu0 0.0
        %2160 = vmatpush.msra.mxu0 0.0
        %2161 = vmatpush.msra.mxu0 0.0
        %2162 = vmatpush.msra.mxu0 0.0
        %2163 = vmatpush.msra.mxu0 0.0
        %2164 = vmatpush.msra.mxu0 0.0
        %2165 = vmatpush.msra.mxu0 0.0
        %2166 = vmatpush.msra.mxu0 0.0
        %2167 = vmatpush.msra.mxu0 0.0
        %2168 = vmatpush.msra.mxu0 0.0
        %2169 = vmatpush.msra.mxu0 0.0
        %2170 = vmatpush.msra.mxu0 0.0
        %2171 = vmatpush.msra.mxu0 0.0
        %2172 = vmatpush.msra.mxu0 0.0
        %2173 = vmatpush.msra.mxu0 %v2156
        %2174 = vmatmul.f32.gmra.mxu0 %v1804
        %v2175 = vpop.f32.mrf.mxu0
        %v2176 = vadd.f32 0.0, %v2175
        %2177 = vdwg.mxu0
        %2178 = vmatpush.msra.mxu0 0.0
        %2179 = vmatpush.msra.mxu0 0.0
        %2180 = vmatpush.msra.mxu0 0.0
        %2181 = vmatpush.msra.mxu0 0.0
        %2182 = vmatpush.msra.mxu0 0.0
        %2183 = vmatpush.msra.mxu0 0.0
        %2184 = vmatpush.msra.mxu0 0.0
        %2185 = vmatpush.msra.mxu0 0.0
        %2186 = vmatpush.msra.mxu0 0.0
        %2187 = vmatpush.msra.mxu0 0.0
        %2188 = vmatpush.msra.mxu0 0.0
        %2189 = vmatpush.msra.mxu0 0.0
        %2190 = vmatpush.msra.mxu0 0.0
        %2191 = vmatpush.msra.mxu0 0.0
        %2192 = vmatpush.msra.mxu0 0.0
        %2193 = vmatpush.msra.mxu0 %v2157
        %2194 = vmatmul.f32.gmra.mxu0 %v1804
        %v2195 = vpop.f32.mrf.mxu0
        %v2196 = vadd.f32 0.0, %v2195
        %2197 = vdwg.mxu0
        %v2198 = vmul.f32 %v2176, %v1012
        %v2199 = vmul.f32 %v2196, %v1038
        %v2200 = vadd.f32 %v2152, %v2198
        %v2201 = vadd.f32 %v2153, %v2199
        %v2202 = vsub.f32 %v1848, %v2200
        %v2203 = vsub.f32 %v1849, %v2201
        %v2206 = vrot.slane %v2203, 4
        %v2207 = vsel %vm1354, %v2202, %v2206
        %2209 = vst [vmem:[%s137] sm:$0xff] %v2207
        %s2210 = sand.u32 %s71, 1
        %s2211 = scalar_lea.sflag [#allocation3], %s2210
        %s2212 = sand.u32 %s71, 1
        %s2213 = smul.addr %s2212, 8
        %s2214 = scalar_lea.vmem [#allocation2], %s2213
        // Predicated region
        $region29: #{gradient_dynamics_forward.1} parent=27 // pred_check
          %p2215 = pneg %p81
        $region30: #{gradient_dynamics_forward.1} parent=27 // pred_check_branch
          %2217 = sbr.rel (%p2215) target = $region32
        $region31: #{gradient_dynamics_forward.1} parent=27 // pred_region
          %s2218 = smul.u32 2, %s16
          %2220 = vsyncadd %s2211, 0
          %s2221 = smul.addr %s2218, 4
          %s2222 = scalar_lea.hbm %s2, %s2221
          %s2224 = sshll.u32 %s2214, 4
          %s2225 = int_to_ptr.vmem [resolvable:$true] %s2224
          %s2226 = sshll.u32 %s2222, 4
          %s2227 = int_to_ptr.hbm [resolvable:$true] %s2226
          %2229 = dma.vmem_to_hbm [thread:$0]  %s2225, 128, %s2227, %s2211
        $region32: #{gradient_dynamics_forward.1} parent=27 // pred_fallthru
          _
      $region28: #{gradient_dynamics_forward.1} parent=5 // pred_fallthru
        _
      %p2230 = scmp.le.s32.totalorder 2, %s11
      // Predicated region
      $region33: #{gradient_dynamics_forward.1} parent=5 // pred_check
        %p2231 = pneg %p2230
      $region34: #{gradient_dynamics_forward.1} parent=5 // pred_check_branch
        %2233 = sbr.rel (%p2231) target = $region36
      $region35: #{gradient_dynamics_forward.1} parent=5 // pred_region
        %s2234 = ssub.s32 %s11, 2
        // Predicated region
        $region37: #{gradient_dynamics_forward.1} parent=35 // pred_check
          %p2235 = pneg %p87
        $region38: #{gradient_dynamics_forward.1} parent=35 // pred_check_branch
          %2237 = sbr.rel (%p2235) target = $region40
        $region39: #{gradient_dynamics_forward.1} parent=35 // pred_region
          %s2238 = sand.u32 %s72, 1
          %s2239 = scalar_lea.sflag [#allocation3], %s2238
          %s2240 = sand.u32 %s72, 1
          %s2241 = smul.addr %s2240, 8
          %s2242 = scalar_lea.vmem [#allocation2], %s2241
          %2244 = dma.done %s2239, 128
        $region40: #{gradient_dynamics_forward.1} parent=35 // pred_fallthru
          _
      $region36: #{gradient_dynamics_forward.1} parent=5 // pred_fallthru
        _
    $region6: #{gradient_dynamics_forward.1} parent=1 // loop_footer
      %s15 = sadd.s32 1, %s11
    $region7: #{gradient_dynamics_forward.1} parent=1 // loop_footer_branch
      %10 = sbr.rel target = $region3
    $region8: #{gradient_dynamics_forward.1} parent=1 // loop_exit
      _
    %2245 = vsyncpa [#allocation3], 1
    %s2246 = scalar_lea.sflag [#allocation3], 1
    %2247 = vsyncpa %s2246, 1

</llo_original>
